<compile_context>
chip_gen: v7x
topology: tpu7x:2x2x1
jax: 0.10.0
libtpu: 0.0.40
codegen_flags: <defaults>
</compile_context>

<pallas_src>
import functools

import jax
import jax.numpy as jnp
from jax import lax
from jax.experimental import pallas as pl
from jax.experimental.pallas import tpu as pltpu


def _round_up(v, m):
    return ((v + m - 1) // m) * m


# -----------------------------------------------------------------------------
# Fused kernel: the whole TCN stack in one pallas_call, grid over batch tiles.
# -----------------------------------------------------------------------------
def _make_tcn_kernel(layer_cfgs, C0, T, k, Bt, Sp, M, c_max):
    """layer_cfgs: list of (Cin, Cout, dilation, pad, has_ds, fuse_ds)."""
    Wtot = Bt * Sp
    N = Wtot - 2 * M            # width of the computed (lane) region
    num_layers = len(layer_cfgs)

    def kernel(*refs):
        x_ref = refs[0]         # (1, C0, Wtot) bf16, pre-padded lane-dense segments
        o_ref = refs[-3]        # (Bt, c_last, T) f32
        buf_a = refs[-2]        # (c_max, Wtot) bf16: layer input / residual source
        buf_b = refs[-1]        # (c_max, Wtot) bf16: conv1 intermediate
        wrefs = refs[1:-3]

        # Only the M-wide left/right margins ever need zeros (taps read at most
        # p <= M columns outside the computed region); the inter-segment gaps
        # are re-zeroed by the masked writes below.  Done every grid step (tiny
        # cost) so it is safe if the batch axis is split across TensorCores.
        if M > 0:
            zpad = jnp.zeros((c_max, M), jnp.bfloat16)
            buf_a[:, 0:M] = zpad
            buf_a[:, Wtot - M:Wtot] = zpad
            buf_b[:, 0:M] = zpad
            buf_b[:, Wtot - M:Wtot] = zpad

        # One aligned full-width copy; wrapper already built the padded layout.
        buf_a[0:C0, :] = x_ref[0]

        # Lane mask over the computed region [M, M+N): 1 on real time-steps.
        col = lax.broadcasted_iota(jnp.int32, (1, N), 1)
        mask = (col >= 0) & (col < T)
        for b in range(1, Bt):
            mask = mask | ((col >= b * Sp) & (col < b * Sp + T))

        def conv(buf, cin, w_ref, sh_ref, d, p):
            # im2col: k dilated slices stacked on the contraction dim -> ONE matmul.
            slices = [buf[0:cin, M - p + j * d:M - p + j * d + N] for j in range(k)]
            rhs = jnp.concatenate(slices, axis=0)          # already bf16
            return jnp.dot(w_ref[...], rhs,
                           preferred_element_type=jnp.float32) + sh_ref[...]

        wi = 0
        for li, (cin, cout, d, p, has_ds, fuse_ds) in enumerate(layer_cfgs):
            w1_ref, sh1_ref, w2_ref, sh2_ref = wrefs[wi:wi + 4]
            wi += 4
            if has_ds and not fuse_ds:
                wd_ref, bd_ref = wrefs[wi:wi + 2]
                wi += 2

            if fuse_ds:
                # conv1 and the 1x1 downsample share one MXU matmul: the extra
                # `cout` rows of w1 hold the (center-tap-only) downsample weights.
                acc = conv(buf_a, cin, w1_ref, sh1_ref, d, p)     # (2*cout, N)
                h = jnp.maximum(acc[0:cout], 0.0)
                res = acc[cout:2 * cout]
            else:
                h = jnp.maximum(conv(buf_a, cin, w1_ref, sh1_ref, d, p), 0.0)
                if has_ds:
                    xc = buf_a[0:cin, M:M + N]
                    res = jnp.dot(wd_ref[...], xc,
                                  preferred_element_type=jnp.float32) + bd_ref[...]
                else:
                    res = buf_a[0:cin, M:M + N].astype(jnp.float32)

            # conv1 + BN1 + ReLU (dropout = identity); mask gaps, store bf16.
            buf_b[0:cout, M:M + N] = jnp.where(mask, h, 0.0).astype(jnp.bfloat16)

            # conv2 + BN2 + ReLU, residual add, final ReLU — all in f32 vregs.
            out = jnp.maximum(conv(buf_b, cout, w2_ref, sh2_ref, d, p), 0.0)
            y = jnp.maximum(out + res, 0.0)

            if li == num_layers - 1:
                # Write straight into the (Bt, C, T) output block; segment
                # bases b*Sp are 128-lane aligned.
                for b in range(Bt):
                    o_ref[b, :, :] = y[:, b * Sp:b * Sp + T].astype(o_ref.dtype)
            else:
                buf_a[0:cout, M:M + N] = jnp.where(mask, y, 0.0).astype(jnp.bfloat16)

    return kernel


def _fold_conv_bn(w, b, g, beta, rm, rv, eps=1e-5):
    """Fold conv bias + inference BatchNorm into the conv weight (im2col layout).

    w: (Cout, Cin, k) -> W_folded (Cout, k*Cin) with W_folded[o, j*Cin+i] = s[o]*w[o,i,j]
    shift: (Cout, 1) = s*(b - running_mean) + beta
    """
    cout = w.shape[0]
    s = g / jnp.sqrt(rv + eps)
    wf = jnp.transpose(w, (0, 2, 1)).reshape(cout, -1) * s[:, None]
    shift = (s * (b - rm) + beta)[:, None]
    return wf.astype(jnp.float32), shift.astype(jnp.float32)


# -----------------------------------------------------------------------------
# VMEM budgeting + batch-tile picking
# -----------------------------------------------------------------------------
def _vmem_estimate(Bt, Sp, C0, c_max, c_last, T, weight_bytes):
    wtot = Bt * Sp
    scratch = 2 * c_max * wtot * 2          # two bf16 activation buffers
    in_blk = 2 * C0 * wtot * 2              # bf16 input block, double-buffered
    out_blk = 2 * Bt * c_last * T * 4       # f32 output block, double-buffered
    return scratch + in_blk + out_blk + 2 * weight_bytes


def _pick_batch_tile(B, Sp, C0, c_max, c_last, T, weight_bytes,
                     budget_bytes=40 << 20):
    """Largest batch tile fitting the VMEM budget; prefer >=2 grid steps so a
    2-TensorCore chip (v7x) can split the 'parallel' batch axis."""
    divisors = sorted((d for d in range(1, B + 1) if B % d == 0), reverse=True)
    fits = lambda bt: _vmem_estimate(bt, Sp, C0, c_max, c_last, T,
                                     weight_bytes) <= budget_bytes
    for bt in divisors:
        if B // bt >= 2 and fits(bt):
            return bt
    for bt in divisors:
        if fits(bt):
            return bt
    return 1


# -----------------------------------------------------------------------------
# Wrapper
# -----------------------------------------------------------------------------
def temporal_conv_net_pallas(x, params, kernel_size, batch_tile=None):
    """TemporalConvNet forward.  x: (B, C0, T) f32 -> (B, C_last, T) f32."""
    B, C0, T = x.shape
    k = kernel_size
    L = len(params)

    dils = [2 ** i for i in range(L)]
    pads = []
    for d in dils:
        assert (k - 1) * d % 2 == 0, "symmetric chomp requires even (k-1)*dilation"
        pads.append((k - 1) * d // 2)
    M = max(pads)                        # fixed alignment margin for every layer
    Sp = _round_up(T + 2 * M, 128)       # 128-lane aligned per-batch segment width

    # ---- fold BN into conv weights; fuse downsample into conv1 when k is odd ----
    fuse_ok = (k % 2 == 1)               # center tap j=(k-1)/2 must exist
    layer_cfgs, weight_ops = [], []
    c_prev, c_max = C0, C0
    for li, prm in enumerate(params):
        cout = prm["w1"].shape[0]
        cin = c_prev
        d, p = dils[li], pads[li]
        has_ds = cin != cout
        fuse_ds = has_ds and fuse_ok

        w1f, sh1 = _fold_conv_bn(prm["w1"], prm["b1"], prm["g1"],
                                 prm["beta1"], prm["rm1"], prm["rv1"])
        w2f, sh2 = _fold_conv_bn(prm["w2"], prm["b2"], prm["g2"],
                                 prm["beta2"], prm["rm2"], prm["rv2"])
        if fuse_ds:
            jc = (k - 1) // 2            # center tap: jc*d == p (k odd)
            wd = prm["wd"][:, :, 0].astype(jnp.float32)
            wd_pad = jnp.zeros((cout, k * cin), jnp.float32)
            wd_pad = wd_pad.at[:, jc * cin:(jc + 1) * cin].set(wd)
            w1_aug = jnp.concatenate([w1f, wd_pad], axis=0)
            sh1_aug = jnp.concatenate(
                [sh1, prm["bd"].astype(jnp.float32)[:, None]], axis=0)
            ops = [w1_aug.astype(jnp.bfloat16), sh1_aug,
                   w2f.astype(jnp.bfloat16), sh2]
        else:
            ops = [w1f.astype(jnp.bfloat16), sh1,
                   w2f.astype(jnp.bfloat16), sh2]
            if has_ds:
                ops += [prm["wd"][:, :, 0].astype(jnp.bfloat16),
                        prm["bd"].astype(jnp.float32)[:, None]]
        weight_ops.append(ops)
        layer_cfgs.append((cin, cout, d, p, has_ds, fuse_ds))
        c_prev, c_max = cout, max(c_max, cout)
    c_last = c_prev
    weight_bytes = sum(int(op.size) * op.dtype.itemsize
                       for ops in weight_ops for op in ops)

    if batch_tile is None:
        batch_tile = _pick_batch_tile(B, Sp, C0, c_max, c_last, T, weight_bytes)
    Bt = batch_tile
    assert B % Bt == 0, (B, Bt)
    Wtot = Bt * Sp

    # ---- pre-layout the input: zero-padded, lane-dense bf16 segments ----
    xb = jnp.pad(x.astype(jnp.bfloat16), ((0, 0), (0, 0), (M, Sp - T - M)))
    xb = xb.reshape(B // Bt, Bt, C0, Sp).transpose(0, 2, 1, 3)
    xb = xb.reshape(B // Bt, C0, Wtot)

    operands = [xb]
    in_specs = [pl.BlockSpec((1, C0, Wtot), lambda i: (i, 0, 0))]
    for ops in weight_ops:
        for op in ops:
            operands.append(op)
            in_specs.append(pl.BlockSpec(op.shape, lambda i: (0, 0)))

    est = _vmem_estimate(Bt, Sp, C0, c_max, c_last, T, weight_bytes)
    vmem_limit = int(min(64 << 20, max(32 << 20, est * 3 // 2 + (4 << 20))))

    kernel = _make_tcn_kernel(layer_cfgs, C0, T, k, Bt, Sp, M, c_max)

    out = pl.pallas_call(
        kernel,
        out_shape=jax.ShapeDtypeStruct((B, c_last, T), jnp.float32),
        grid_spec=pltpu.PrefetchScalarGridSpec(
            num_scalar_prefetch=0,
            grid=(B // Bt,),
            in_specs=in_specs,
            out_specs=pl.BlockSpec((Bt, c_last, T), lambda i: (i, 0, 0)),
            scratch_shapes=[pltpu.VMEM((c_max, Wtot), jnp.bfloat16),
                            pltpu.VMEM((c_max, Wtot), jnp.bfloat16)],
        ),
        compiler_params=pltpu.CompilerParams(
            dimension_semantics=("parallel",),
            vmem_limit_bytes=vmem_limit),
    )(*operands)
    return out


# -----------------------------------------------------------------------------
# Deterministic parameter init (synthetic, inference-mode BN stats)
# -----------------------------------------------------------------------------
def init_block_params(key, Cin, Cout, k):
    ks = jax.random.split(key, 14)
    p = {
        "w1": 0.25 * jax.random.normal(ks[0], (Cout, Cin, k), jnp.float32),
        "b1": 0.1 * jax.random.normal(ks[1], (Cout,), jnp.float32),
        "g1": 1.0 + 0.1 * jax.random.normal(ks[2], (Cout,), jnp.float32),
        "beta1": 0.1 * jax.random.normal(ks[3], (Cout,), jnp.float32),
        "rm1": 0.1 * jax.random.normal(ks[4], (Cout,), jnp.float32),
        "rv1": 1.0 + jnp.abs(jax.random.normal(ks[5], (Cout,), jnp.float32)),
        "w2": 0.25 * jax.random.normal(ks[6], (Cout, Cout, k), jnp.float32),
        "b2": 0.1 * jax.random.normal(ks[7], (Cout,), jnp.float32),
        "g2": 1.0 + 0.1 * jax.random.normal(ks[8], (Cout,), jnp.float32),
        "beta2": 0.1 * jax.random.normal(ks[9], (Cout,), jnp.float32),
        "rm2": 0.1 * jax.random.normal(ks[10], (Cout,), jnp.float32),
        "rv2": 1.0 + jnp.abs(jax.random.normal(ks[11], (Cout,), jnp.float32)),
    }
    if Cin != Cout:
        p["wd"] = 0.25 * jax.random.normal(ks[12], (Cout, Cin, 1), jnp.float32)
        p["bd"] = 0.1 * jax.random.normal(ks[13], (Cout,), jnp.float32)
    return p


# -----------------------------------------------------------------------------
# Pure-JAX f32 reference (PyTorch semantics, for correctness check)
# -----------------------------------------------------------------------------
def _conv1d_ref(x, w, b, d, pad):
    out = lax.conv_general_dilated(
        x, w, window_strides=(1,), padding=[(pad, pad)],
        rhs_dilation=(d,), dimension_numbers=("NCH", "OIH", "NCH"))
    return out + b[None, :, None]


def _bn_ref(x, g, beta, mean, var, eps=1e-5):
    s = g / jnp.sqrt(var + eps)
    return x * s[None, :, None] + (beta - mean * s)[None, :, None]


def _block_ref(x, p, k, d):
    pad = (k - 1) * d // 2
    h = _conv1d_ref(x, p["w1"], p["b1"], d, pad)
    h = jax.nn.relu(_bn_ref(h, p["g1"], p["beta1"], p["rm1"], p["rv1"]))
    o = _conv1d_ref(h, p["w2"], p["b2"], d, pad)
    o = jax.nn.relu(_bn_ref(o, p["g2"], p["beta2"], p["rm2"], p["rv2"]))
    res = _conv1d_ref(x, p["wd"], p["bd"], 1, 0) if "wd" in p else x
    return jax.nn.relu(o + res)


def _tcn_ref(x, params, k):
    out = x
    for i, p in enumerate(params):
        out = _block_ref(out, p, k, 2 ** i)
    return out


# -----------------------------------------------------------------------------
if __name__ == "__main__":
    key = jax.random.PRNGKey(0)

    # Small TCN config: num_inputs=16, num_channels=[16, 32, 32], kernel_size=3
    # (channel counts kept multiples of 16 = bf16 sublane packing).
    num_inputs = 16
    num_channels = [16, 32, 32]
    kernel_size = 3
    B, T = 4, 64

    k_x, k_p = jax.random.split(key)
    x = jax.random.normal(k_x, (B, num_inputs, T), jnp.float32)

    params = []
    pkeys = jax.random.split(k_p, len(num_channels))
    for i, cout in enumerate(num_channels):
        cin = num_inputs if i == 0 else num_channels[i - 1]
        params.append(init_block_params(pkeys[i], cin, cout, kernel_size))

    run = jax.jit(functools.partial(temporal_conv_net_pallas,
                                    kernel_size=kernel_size))
    out = jax.block_until_ready(run(x, params))
    ref = jax.block_until_ready(_tcn_ref(x, params, kernel_size))

    assert out.shape == (B, num_channels[-1], T), out.shape
    # bf16 MXU operands / bf16 activation buffers with f32 accumulation
    # vs. pure-f32 reference.
    max_err = float(jnp.max(jnp.abs(out - ref)))
    assert jnp.allclose(out, ref, rtol=5e-2, atol=1e-1), max_err

    print("KERNEL_OK")
</pallas_src>

<mosaic_0001>
module attributes {stable_mosaic.version = 11 : i64} {
  func.func @kernel(%arg0: i32, %arg1: memref<1x16x256xbf16, #tpu.memory_space<vmem>>, %arg2: memref<16x48xbf16, #tpu.memory_space<vmem>>, %arg3: memref<16x1xf32, #tpu.memory_space<vmem>>, %arg4: memref<16x48xbf16, #tpu.memory_space<vmem>>, %arg5: memref<16x1xf32, #tpu.memory_space<vmem>>, %arg6: memref<64x48xbf16, #tpu.memory_space<vmem>>, %arg7: memref<64x1xf32, #tpu.memory_space<vmem>>, %arg8: memref<32x96xbf16, #tpu.memory_space<vmem>>, %arg9: memref<32x1xf32, #tpu.memory_space<vmem>>, %arg10: memref<32x96xbf16, #tpu.memory_space<vmem>>, %arg11: memref<32x1xf32, #tpu.memory_space<vmem>>, %arg12: memref<32x96xbf16, #tpu.memory_space<vmem>>, %arg13: memref<32x1xf32, #tpu.memory_space<vmem>>, %arg14: memref<2x32x64xf32, #tpu.memory_space<vmem>>, %arg15: memref<32x256xbf16, #tpu.memory_space<vmem>>, %arg16: memref<32x256xbf16, #tpu.memory_space<vmem>>) attributes {dimension_semantics = [#tpu.dimension_semantics<parallel>], iteration_bounds = array<i64: 2>, scalar_prefetch = 0 : i64, scratch_operands = 2 : i64, tpu.core_type = #tpu.core_type<tc>, window_params = [{transform_indices = @transform_0, window_bounds = array<i64: 1, 16, 256>}, {pipeline_mode = #tpu.pipeline_mode<synchronous>, transform_indices = @transform_1, window_bounds = array<i64: 16, 48>}, {pipeline_mode = #tpu.pipeline_mode<synchronous>, transform_indices = @transform_2, window_bounds = array<i64: 16, 1>}, {pipeline_mode = #tpu.pipeline_mode<synchronous>, transform_indices = @transform_3, window_bounds = array<i64: 16, 48>}, {pipeline_mode = #tpu.pipeline_mode<synchronous>, transform_indices = @transform_4, window_bounds = array<i64: 16, 1>}, {pipeline_mode = #tpu.pipeline_mode<synchronous>, transform_indices = @transform_5, window_bounds = array<i64: 64, 48>}, {pipeline_mode = #tpu.pipeline_mode<synchronous>, transform_indices = @transform_6, window_bounds = array<i64: 64, 1>}, {pipeline_mode = #tpu.pipeline_mode<synchronous>, transform_indices = @transform_7, window_bounds = array<i64: 32, 96>}, {pipeline_mode = #tpu.pipeline_mode<synchronous>, transform_indices = @transform_8, window_bounds = array<i64: 32, 1>}, {pipeline_mode = #tpu.pipeline_mode<synchronous>, transform_indices = @transform_9, window_bounds = array<i64: 32, 96>}, {pipeline_mode = #tpu.pipeline_mode<synchronous>, transform_indices = @transform_10, window_bounds = array<i64: 32, 1>}, {pipeline_mode = #tpu.pipeline_mode<synchronous>, transform_indices = @transform_11, window_bounds = array<i64: 32, 96>}, {pipeline_mode = #tpu.pipeline_mode<synchronous>, transform_indices = @transform_12, window_bounds = array<i64: 32, 1>}, {transform_indices = @transform_13, window_bounds = array<i64: 2, 32, 64>}]} {
    %cst = arith.constant 0.000000e+00 : bf16
    %0 = vector.broadcast %cst : bf16 to vector<32x4xbf16>
    %c0 = arith.constant 0 : index
    %c0_0 = arith.constant 0 : index
    %1 = vector.load %arg15[%c0, %c0_0] : memref<32x256xbf16, #tpu.memory_space<vmem>>, vector<32x4xbf16>
    tpu.vector_store %arg15[%c0, %c0_0], %0 {strides = array<i32>} : memref<32x256xbf16, #tpu.memory_space<vmem>>, vector<32x4xbf16>,
    %c0_1 = arith.constant 0 : index
    %c252 = arith.constant 252 : index
    %2 = vector.load %arg15[%c0_1, %c252] : memref<32x256xbf16, #tpu.memory_space<vmem>>, vector<32x4xbf16>
    tpu.vector_store %arg15[%c0_1, %c252], %0 {strides = array<i32>} : memref<32x256xbf16, #tpu.memory_space<vmem>>, vector<32x4xbf16>,
    %c0_2 = arith.constant 0 : index
    %c0_3 = arith.constant 0 : index
    %3 = vector.load %arg16[%c0_2, %c0_3] : memref<32x256xbf16, #tpu.memory_space<vmem>>, vector<32x4xbf16>
    tpu.vector_store %arg16[%c0_2, %c0_3], %0 {strides = array<i32>} : memref<32x256xbf16, #tpu.memory_space<vmem>>, vector<32x4xbf16>,
    %c0_4 = arith.constant 0 : index
    %c252_5 = arith.constant 252 : index
    %4 = vector.load %arg16[%c0_4, %c252_5] : memref<32x256xbf16, #tpu.memory_space<vmem>>, vector<32x4xbf16>
    tpu.vector_store %arg16[%c0_4, %c252_5], %0 {strides = array<i32>} : memref<32x256xbf16, #tpu.memory_space<vmem>>, vector<32x4xbf16>,
    %c0_6 = arith.constant 0 : index
    %c0_7 = arith.constant 0 : index
    %c0_8 = arith.constant 0 : index
    %5 = vector.load %arg1[%c0_6, %c0_7, %c0_8] : memref<1x16x256xbf16, #tpu.memory_space<vmem>>, vector<1x16x256xbf16>
    %6 = vector.shape_cast %5 : vector<1x16x256xbf16> to vector<16x256xbf16>
    %c0_9 = arith.constant 0 : index
    %c0_10 = arith.constant 0 : index
    %7 = vector.load %arg15[%c0_9, %c0_10] : memref<32x256xbf16, #tpu.memory_space<vmem>>, vector<16x256xbf16>
    tpu.vector_store %arg15[%c0_9, %c0_10], %6 {strides = array<i32>} : memref<32x256xbf16, #tpu.memory_space<vmem>>, vector<16x256xbf16>,
    %8 = tpu.iota {dimensions = array<i32: 1>} : vector<1x248xi32>
    %c0_i32 = arith.constant 0 : i32
    %9 = vector.broadcast %c0_i32 : i32 to vector<1x248xi32>
    %10 = arith.cmpi sge, %8, %9 : vector<1x248xi32>
    %c64_i32 = arith.constant 64 : i32
    %11 = vector.broadcast %c64_i32 : i32 to vector<1x248xi32>
    %12 = arith.cmpi slt, %8, %11 : vector<1x248xi32>
    %13 = arith.andi %10, %12 : vector<1x248xi1>
    %c128_i32 = arith.constant 128 : i32
    %14 = vector.broadcast %c128_i32 : i32 to vector<1x248xi32>
    %15 = arith.cmpi sge, %8, %14 : vector<1x248xi32>
    %c192_i32 = arith.constant 192 : i32
    %16 = vector.broadcast %c192_i32 : i32 to vector<1x248xi32>
    %17 = arith.cmpi slt, %8, %16 : vector<1x248xi32>
    %18 = arith.andi %15, %17 : vector<1x248xi1>
    %19 = arith.ori %13, %18 : vector<1x248xi1>
    %c0_11 = arith.constant 0 : index
    %c3 = arith.constant 3 : index
    %20 = vector.load %arg15[%c0_11, %c3] : memref<32x256xbf16, #tpu.memory_space<vmem>>, vector<16x248xbf16>
    %c0_12 = arith.constant 0 : index
    %c4 = arith.constant 4 : index
    %21 = vector.load %arg15[%c0_12, %c4] : memref<32x256xbf16, #tpu.memory_space<vmem>>, vector<16x248xbf16>
    %c0_13 = arith.constant 0 : index
    %c5 = arith.constant 5 : index
    %22 = vector.load %arg15[%c0_13, %c5] : memref<32x256xbf16, #tpu.memory_space<vmem>>, vector<16x248xbf16>
    %23 = tpu.concatenate %20, %21, %22 in 0 : vector<16x248xbf16>, vector<16x248xbf16>, vector<16x248xbf16> -> vector<48x248xbf16>
    %c0_14 = arith.constant 0 : index
    %c0_15 = arith.constant 0 : index
    %24 = vector.load %arg2[%c0_14, %c0_15] : memref<16x48xbf16, #tpu.memory_space<vmem>>, vector<16x48xbf16>
    %cst_16 = arith.constant dense<0.000000e+00> : vector<16x248xf32>
    %25 = tpu.matmul %24, %23, %cst_16 {dimension_numbers = #tpu.dot_dimension_numbers<[1], [0], [0], [1], [0, 0, 1, 1], [], []>} : vector<16x48xbf16>, vector<48x248xbf16>, vector<16x248xf32> -> vector<16x248xf32>
    %c0_17 = arith.constant 0 : index
    %c0_18 = arith.constant 0 : index
    %26 = vector.load %arg3[%c0_17, %c0_18] : memref<16x1xf32, #tpu.memory_space<vmem>>, vector<16x1xf32>
    %27 = vector.broadcast %26 : vector<16x1xf32> to vector<16x248xf32>
    %28 = arith.addf %25, %27 : vector<16x248xf32>
    %cst_19 = arith.constant 0.000000e+00 : f32
    %29 = vector.broadcast %cst_19 : f32 to vector<16x248xf32>
    %30 = arith.maximumf %28, %29 : vector<16x248xf32>
    %c0_20 = arith.constant 0 : index
    %c4_21 = arith.constant 4 : index
    %31 = vector.load %arg15[%c0_20, %c4_21] : memref<32x256xbf16, #tpu.memory_space<vmem>>, vector<16x248xbf16>
    %32 = arith.extf %31 : vector<16x248xbf16> to vector<16x248xf32>
    %cst_22 = arith.constant 0.000000e+00 : f32
    %33 = vector.shape_cast %19 : vector<1x248xi1> to vector<1x248xi1>
    %34 = vector.broadcast %33 : vector<1x248xi1> to vector<16x248xi1>
    %35 = vector.broadcast %cst_22 : f32 to vector<16x248xf32>
    %36 = arith.select %34, %30, %35 : vector<16x248xi1>, vector<16x248xf32>
    %37 = arith.truncf %36 : vector<16x248xf32> to vector<16x248xbf16>
    %c0_23 = arith.constant 0 : index
    %c4_24 = arith.constant 4 : index
    %38 = vector.load %arg16[%c0_23, %c4_24] : memref<32x256xbf16, #tpu.memory_space<vmem>>, vector<16x248xbf16>
    tpu.vector_store %arg16[%c0_23, %c4_24], %37 {strides = array<i32>} : memref<32x256xbf16, #tpu.memory_space<vmem>>, vector<16x248xbf16>,
    %c0_25 = arith.constant 0 : index
    %c3_26 = arith.constant 3 : index
    %39 = vector.load %arg16[%c0_25, %c3_26] : memref<32x256xbf16, #tpu.memory_space<vmem>>, vector<16x248xbf16>
    %c0_27 = arith.constant 0 : index
    %c4_28 = arith.constant 4 : index
    %40 = vector.load %arg16[%c0_27, %c4_28] : memref<32x256xbf16, #tpu.memory_space<vmem>>, vector<16x248xbf16>
    %c0_29 = arith.constant 0 : index
    %c5_30 = arith.constant 5 : index
    %41 = vector.load %arg16[%c0_29, %c5_30] : memref<32x256xbf16, #tpu.memory_space<vmem>>, vector<16x248xbf16>
    %42 = tpu.concatenate %39, %40, %41 in 0 : vector<16x248xbf16>, vector<16x248xbf16>, vector<16x248xbf16> -> vector<48x248xbf16>
    %c0_31 = arith.constant 0 : index
    %c0_32 = arith.constant 0 : index
    %43 = vector.load %arg4[%c0_31, %c0_32] : memref<16x48xbf16, #tpu.memory_space<vmem>>, vector<16x48xbf16>
    %cst_33 = arith.constant dense<0.000000e+00> : vector<16x248xf32>
    %44 = tpu.matmul %43, %42, %cst_33 {dimension_numbers = #tpu.dot_dimension_numbers<[1], [0], [0], [1], [0, 0, 1, 1], [], []>} : vector<16x48xbf16>, vector<48x248xbf16>, vector<16x248xf32> -> vector<16x248xf32>
    %c0_34 = arith.constant 0 : index
    %c0_35 = arith.constant 0 : index
    %45 = vector.load %arg5[%c0_34, %c0_35] : memref<16x1xf32, #tpu.memory_space<vmem>>, vector<16x1xf32>
    %46 = vector.broadcast %45 : vector<16x1xf32> to vector<16x248xf32>
    %47 = arith.addf %44, %46 : vector<16x248xf32>
    %cst_36 = arith.constant 0.000000e+00 : f32
    %48 = vector.broadcast %cst_36 : f32 to vector<16x248xf32>
    %49 = arith.maximumf %47, %48 : vector<16x248xf32>
    %50 = arith.addf %49, %32 : vector<16x248xf32>
    %cst_37 = arith.constant 0.000000e+00 : f32
    %51 = vector.broadcast %cst_37 : f32 to vector<16x248xf32>
    %52 = arith.maximumf %50, %51 : vector<16x248xf32>
    %cst_38 = arith.constant 0.000000e+00 : f32
    %53 = vector.shape_cast %19 : vector<1x248xi1> to vector<1x248xi1>
    %54 = vector.broadcast %53 : vector<1x248xi1> to vector<16x248xi1>
    %55 = vector.broadcast %cst_38 : f32 to vector<16x248xf32>
    %56 = arith.select %54, %52, %55 : vector<16x248xi1>, vector<16x248xf32>
    %57 = arith.truncf %56 : vector<16x248xf32> to vector<16x248xbf16>
    %c0_39 = arith.constant 0 : index
    %c4_40 = arith.constant 4 : index
    %58 = vector.load %arg15[%c0_39, %c4_40] : memref<32x256xbf16, #tpu.memory_space<vmem>>, vector<16x248xbf16>
    tpu.vector_store %arg15[%c0_39, %c4_40], %57 {strides = array<i32>} : memref<32x256xbf16, #tpu.memory_space<vmem>>, vector<16x248xbf16>,
    %c0_41 = arith.constant 0 : index
    %c2 = arith.constant 2 : index
    %59 = vector.load %arg15[%c0_41, %c2] : memref<32x256xbf16, #tpu.memory_space<vmem>>, vector<16x248xbf16>
    %c0_42 = arith.constant 0 : index
    %c4_43 = arith.constant 4 : index
    %60 = vector.load %arg15[%c0_42, %c4_43] : memref<32x256xbf16, #tpu.memory_space<vmem>>, vector<16x248xbf16>
    %c0_44 = arith.constant 0 : index
    %c6 = arith.constant 6 : index
    %61 = vector.load %arg15[%c0_44, %c6] : memref<32x256xbf16, #tpu.memory_space<vmem>>, vector<16x248xbf16>
    %62 = tpu.concatenate %59, %60, %61 in 0 : vector<16x248xbf16>, vector<16x248xbf16>, vector<16x248xbf16> -> vector<48x248xbf16>
    %c0_45 = arith.constant 0 : index
    %c0_46 = arith.constant 0 : index
    %63 = vector.load %arg6[%c0_45, %c0_46] : memref<64x48xbf16, #tpu.memory_space<vmem>>, vector<64x48xbf16>
    %cst_47 = arith.constant dense<0.000000e+00> : vector<64x248xf32>
    %64 = tpu.matmul %63, %62, %cst_47 {dimension_numbers = #tpu.dot_dimension_numbers<[1], [0], [0], [1], [0, 0, 1, 1], [], []>} : vector<64x48xbf16>, vector<48x248xbf16>, vector<64x248xf32> -> vector<64x248xf32>
    %c0_48 = arith.constant 0 : index
    %c0_49 = arith.constant 0 : index
    %65 = vector.load %arg7[%c0_48, %c0_49] : memref<64x1xf32, #tpu.memory_space<vmem>>, vector<64x1xf32>
    %66 = vector.broadcast %65 : vector<64x1xf32> to vector<64x248xf32>
    %67 = arith.addf %64, %66 : vector<64x248xf32>
    %68 = vector.extract_strided_slice %67 {offsets = [0, 0], sizes = [32, 248], strides = [1, 1]} : vector<64x248xf32> to vector<32x248xf32>
    %cst_50 = arith.constant 0.000000e+00 : f32
    %69 = vector.broadcast %cst_50 : f32 to vector<32x248xf32>
    %70 = arith.maximumf %68, %69 : vector<32x248xf32>
    %71 = vector.extract_strided_slice %67 {offsets = [32, 0], sizes = [32, 248], strides = [1, 1]} : vector<64x248xf32> to vector<32x248xf32>
    %cst_51 = arith.constant 0.000000e+00 : f32
    %72 = vector.shape_cast %19 : vector<1x248xi1> to vector<1x248xi1>
    %73 = vector.broadcast %72 : vector<1x248xi1> to vector<32x248xi1>
    %74 = vector.broadcast %cst_51 : f32 to vector<32x248xf32>
    %75 = arith.select %73, %70, %74 : vector<32x248xi1>, vector<32x248xf32>
    %76 = arith.truncf %75 : vector<32x248xf32> to vector<32x248xbf16>
    %c0_52 = arith.constant 0 : index
    %c4_53 = arith.constant 4 : index
    %77 = vector.load %arg16[%c0_52, %c4_53] : memref<32x256xbf16, #tpu.memory_space<vmem>>, vector<32x248xbf16>
    tpu.vector_store %arg16[%c0_52, %c4_53], %76 {strides = array<i32>} : memref<32x256xbf16, #tpu.memory_space<vmem>>, vector<32x248xbf16>,
    %c0_54 = arith.constant 0 : index
    %c2_55 = arith.constant 2 : index
    %78 = vector.load %arg16[%c0_54, %c2_55] : memref<32x256xbf16, #tpu.memory_space<vmem>>, vector<32x248xbf16>
    %c0_56 = arith.constant 0 : index
    %c4_57 = arith.constant 4 : index
    %79 = vector.load %arg16[%c0_56, %c4_57] : memref<32x256xbf16, #tpu.memory_space<vmem>>, vector<32x248xbf16>
    %c0_58 = arith.constant 0 : index
    %c6_59 = arith.constant 6 : index
    %80 = vector.load %arg16[%c0_58, %c6_59] : memref<32x256xbf16, #tpu.memory_space<vmem>>, vector<32x248xbf16>
    %81 = tpu.concatenate %78, %79, %80 in 0 : vector<32x248xbf16>, vector<32x248xbf16>, vector<32x248xbf16> -> vector<96x248xbf16>
    %c0_60 = arith.constant 0 : index
    %c0_61 = arith.constant 0 : index
    %82 = vector.load %arg8[%c0_60, %c0_61] : memref<32x96xbf16, #tpu.memory_space<vmem>>, vector<32x96xbf16>
    %cst_62 = arith.constant dense<0.000000e+00> : vector<32x248xf32>
    %83 = tpu.matmul %82, %81, %cst_62 {dimension_numbers = #tpu.dot_dimension_numbers<[1], [0], [0], [1], [0, 0, 1, 1], [], []>} : vector<32x96xbf16>, vector<96x248xbf16>, vector<32x248xf32> -> vector<32x248xf32>
    %c0_63 = arith.constant 0 : index
    %c0_64 = arith.constant 0 : index
    %84 = vector.load %arg9[%c0_63, %c0_64] : memref<32x1xf32, #tpu.memory_space<vmem>>, vector<32x1xf32>
    %85 = vector.broadcast %84 : vector<32x1xf32> to vector<32x248xf32>
    %86 = arith.addf %83, %85 : vector<32x248xf32>
    %cst_65 = arith.constant 0.000000e+00 : f32
    %87 = vector.broadcast %cst_65 : f32 to vector<32x248xf32>
    %88 = arith.maximumf %86, %87 : vector<32x248xf32>
    %89 = arith.addf %88, %71 : vector<32x248xf32>
    %cst_66 = arith.constant 0.000000e+00 : f32
    %90 = vector.broadcast %cst_66 : f32 to vector<32x248xf32>
    %91 = arith.maximumf %89, %90 : vector<32x248xf32>
    %cst_67 = arith.constant 0.000000e+00 : f32
    %92 = vector.shape_cast %19 : vector<1x248xi1> to vector<1x248xi1>
    %93 = vector.broadcast %92 : vector<1x248xi1> to vector<32x248xi1>
    %94 = vector.broadcast %cst_67 : f32 to vector<32x248xf32>
    %95 = arith.select %93, %91, %94 : vector<32x248xi1>, vector<32x248xf32>
    %96 = arith.truncf %95 : vector<32x248xf32> to vector<32x248xbf16>
    %c0_68 = arith.constant 0 : index
    %c4_69 = arith.constant 4 : index
    %97 = vector.load %arg15[%c0_68, %c4_69] : memref<32x256xbf16, #tpu.memory_space<vmem>>, vector<32x248xbf16>
    tpu.vector_store %arg15[%c0_68, %c4_69], %96 {strides = array<i32>} : memref<32x256xbf16, #tpu.memory_space<vmem>>, vector<32x248xbf16>,
    %c0_70 = arith.constant 0 : index
    %c0_71 = arith.constant 0 : index
    %98 = vector.load %arg15[%c0_70, %c0_71] : memref<32x256xbf16, #tpu.memory_space<vmem>>, vector<32x248xbf16>
    %c0_72 = arith.constant 0 : index
    %c4_73 = arith.constant 4 : index
    %99 = vector.load %arg15[%c0_72, %c4_73] : memref<32x256xbf16, #tpu.memory_space<vmem>>, vector<32x248xbf16>
    %c0_74 = arith.constant 0 : index
    %c8 = arith.constant 8 : index
    %100 = vector.load %arg15[%c0_74, %c8] : memref<32x256xbf16, #tpu.memory_space<vmem>>, vector<32x248xbf16>
    %101 = tpu.concatenate %98, %99, %100 in 0 : vector<32x248xbf16>, vector<32x248xbf16>, vector<32x248xbf16> -> vector<96x248xbf16>
    %c0_75 = arith.constant 0 : index
    %c0_76 = arith.constant 0 : index
    %102 = vector.load %arg10[%c0_75, %c0_76] : memref<32x96xbf16, #tpu.memory_space<vmem>>, vector<32x96xbf16>
    %cst_77 = arith.constant dense<0.000000e+00> : vector<32x248xf32>
    %103 = tpu.matmul %102, %101, %cst_77 {dimension_numbers = #tpu.dot_dimension_numbers<[1], [0], [0], [1], [0, 0, 1, 1], [], []>} : vector<32x96xbf16>, vector<96x248xbf16>, vector<32x248xf32> -> vector<32x248xf32>
    %c0_78 = arith.constant 0 : index
    %c0_79 = arith.constant 0 : index
    %104 = vector.load %arg11[%c0_78, %c0_79] : memref<32x1xf32, #tpu.memory_space<vmem>>, vector<32x1xf32>
    %105 = vector.broadcast %104 : vector<32x1xf32> to vector<32x248xf32>
    %106 = arith.addf %103, %105 : vector<32x248xf32>
    %cst_80 = arith.constant 0.000000e+00 : f32
    %107 = vector.broadcast %cst_80 : f32 to vector<32x248xf32>
    %108 = arith.maximumf %106, %107 : vector<32x248xf32>
    %c0_81 = arith.constant 0 : index
    %c4_82 = arith.constant 4 : index
    %109 = vector.load %arg15[%c0_81, %c4_82] : memref<32x256xbf16, #tpu.memory_space<vmem>>, vector<32x248xbf16>
    %110 = arith.extf %109 : vector<32x248xbf16> to vector<32x248xf32>
    %cst_83 = arith.constant 0.000000e+00 : f32
    %111 = vector.shape_cast %19 : vector<1x248xi1> to vector<1x248xi1>
    %112 = vector.broadcast %111 : vector<1x248xi1> to vector<32x248xi1>
    %113 = vector.broadcast %cst_83 : f32 to vector<32x248xf32>
    %114 = arith.select %112, %108, %113 : vector<32x248xi1>, vector<32x248xf32>
    %115 = arith.truncf %114 : vector<32x248xf32> to vector<32x248xbf16>
    %c0_84 = arith.constant 0 : index
    %c4_85 = arith.constant 4 : index
    %116 = vector.load %arg16[%c0_84, %c4_85] : memref<32x256xbf16, #tpu.memory_space<vmem>>, vector<32x248xbf16>
    tpu.vector_store %arg16[%c0_84, %c4_85], %115 {strides = array<i32>} : memref<32x256xbf16, #tpu.memory_space<vmem>>, vector<32x248xbf16>,
    %c0_86 = arith.constant 0 : index
    %c0_87 = arith.constant 0 : index
    %117 = vector.load %arg16[%c0_86, %c0_87] : memref<32x256xbf16, #tpu.memory_space<vmem>>, vector<32x248xbf16>
    %c0_88 = arith.constant 0 : index
    %c4_89 = arith.constant 4 : index
    %118 = vector.load %arg16[%c0_88, %c4_89] : memref<32x256xbf16, #tpu.memory_space<vmem>>, vector<32x248xbf16>
    %c0_90 = arith.constant 0 : index
    %c8_91 = arith.constant 8 : index
    %119 = vector.load %arg16[%c0_90, %c8_91] : memref<32x256xbf16, #tpu.memory_space<vmem>>, vector<32x248xbf16>
    %120 = tpu.concatenate %117, %118, %119 in 0 : vector<32x248xbf16>, vector<32x248xbf16>, vector<32x248xbf16> -> vector<96x248xbf16>
    %c0_92 = arith.constant 0 : index
    %c0_93 = arith.constant 0 : index
    %121 = vector.load %arg12[%c0_92, %c0_93] : memref<32x96xbf16, #tpu.memory_space<vmem>>, vector<32x96xbf16>
    %cst_94 = arith.constant dense<0.000000e+00> : vector<32x248xf32>
    %122 = tpu.matmul %121, %120, %cst_94 {dimension_numbers = #tpu.dot_dimension_numbers<[1], [0], [0], [1], [0, 0, 1, 1], [], []>} : vector<32x96xbf16>, vector<96x248xbf16>, vector<32x248xf32> -> vector<32x248xf32>
    %c0_95 = arith.constant 0 : index
    %c0_96 = arith.constant 0 : index
    %123 = vector.load %arg13[%c0_95, %c0_96] : memref<32x1xf32, #tpu.memory_space<vmem>>, vector<32x1xf32>
    %124 = vector.broadcast %123 : vector<32x1xf32> to vector<32x248xf32>
    %125 = arith.addf %122, %124 : vector<32x248xf32>
    %cst_97 = arith.constant 0.000000e+00 : f32
    %126 = vector.broadcast %cst_97 : f32 to vector<32x248xf32>
    %127 = arith.maximumf %125, %126 : vector<32x248xf32>
    %128 = arith.addf %127, %110 : vector<32x248xf32>
    %cst_98 = arith.constant 0.000000e+00 : f32
    %129 = vector.broadcast %cst_98 : f32 to vector<32x248xf32>
    %130 = arith.maximumf %128, %129 : vector<32x248xf32>
    %131 = vector.extract_strided_slice %130 {offsets = [0, 0], sizes = [32, 64], strides = [1, 1]} : vector<32x248xf32> to vector<32x64xf32>
    %c0_99 = arith.constant 0 : index
    %c0_100 = arith.constant 0 : index
    %c0_101 = arith.constant 0 : index
    %132 = vector.load %arg14[%c0_99, %c0_100, %c0_101] : memref<2x32x64xf32, #tpu.memory_space<vmem>>, vector<1x32x64xf32>
    %133 = vector.shape_cast %132 : vector<1x32x64xf32> to vector<32x64xf32>
    %134 = vector.shape_cast %131 : vector<32x64xf32> to vector<1x32x64xf32>
    tpu.vector_store %arg14[%c0_99, %c0_100, %c0_101], %134 {strides = array<i32>} : memref<2x32x64xf32, #tpu.memory_space<vmem>>, vector<1x32x64xf32>,
    %135 = vector.extract_strided_slice %130 {offsets = [0, 128], sizes = [32, 64], strides = [1, 1]} : vector<32x248xf32> to vector<32x64xf32>
    %c1 = arith.constant 1 : index
    %c0_102 = arith.constant 0 : index
    %c0_103 = arith.constant 0 : index
    %136 = vector.load %arg14[%c1, %c0_102, %c0_103] : memref<2x32x64xf32, #tpu.memory_space<vmem>>, vector<1x32x64xf32>
    %137 = vector.shape_cast %136 : vector<1x32x64xf32> to vector<32x64xf32>
    %138 = vector.shape_cast %135 : vector<32x64xf32> to vector<1x32x64xf32>
    tpu.vector_store %arg14[%c1, %c0_102, %c0_103], %138 {strides = array<i32>} : memref<2x32x64xf32, #tpu.memory_space<vmem>>, vector<1x32x64xf32>,
    return
  }
  func.func @transform_0(%arg0: i32) -> (i32, i32, i32) {
    %c0_i32 = arith.constant 0 : i32
    %c0_i32_0 = arith.constant 0 : i32
    %c0_i32_1 = arith.constant 0 : i32
    return %arg0, %c0_i32, %c0_i32_0 : i32, i32, i32
  }
  func.func @transform_1(%arg0: i32) -> (i32, i32) {
    %c0_i32 = arith.constant 0 : i32
    %c0_i32_0 = arith.constant 0 : i32
    %c0_i32_1 = arith.constant 0 : i32
    return %c0_i32, %c0_i32_0 : i32, i32
  }
  func.func @transform_2(%arg0: i32) -> (i32, i32) {
    %c0_i32 = arith.constant 0 : i32
    %c0_i32_0 = arith.constant 0 : i32
    %c0_i32_1 = arith.constant 0 : i32
    return %c0_i32, %c0_i32_0 : i32, i32
  }
  func.func @transform_3(%arg0: i32) -> (i32, i32) {
    %c0_i32 = arith.constant 0 : i32
    %c0_i32_0 = arith.constant 0 : i32
    %c0_i32_1 = arith.constant 0 : i32
    return %c0_i32, %c0_i32_0 : i32, i32
  }
  func.func @transform_4(%arg0: i32) -> (i32, i32) {
    %c0_i32 = arith.constant 0 : i32
    %c0_i32_0 = arith.constant 0 : i32
    %c0_i32_1 = arith.constant 0 : i32
    return %c0_i32, %c0_i32_0 : i32, i32
  }
  func.func @transform_5(%arg0: i32) -> (i32, i32) {
    %c0_i32 = arith.constant 0 : i32
    %c0_i32_0 = arith.constant 0 : i32
    %c0_i32_1 = arith.constant 0 : i32
    return %c0_i32, %c0_i32_0 : i32, i32
  }
  func.func @transform_6(%arg0: i32) -> (i32, i32) {
    %c0_i32 = arith.constant 0 : i32
    %c0_i32_0 = arith.constant 0 : i32
    %c0_i32_1 = arith.constant 0 : i32
    return %c0_i32, %c0_i32_0 : i32, i32
  }
  func.func @transform_7(%arg0: i32) -> (i32, i32) {
    %c0_i32 = arith.constant 0 : i32
    %c0_i32_0 = arith.constant 0 : i32
    %c0_i32_1 = arith.constant 0 : i32
    return %c0_i32, %c0_i32_0 : i32, i32
  }
  func.func @transform_8(%arg0: i32) -> (i32, i32) {
    %c0_i32 = arith.constant 0 : i32
    %c0_i32_0 = arith.constant 0 : i32
    %c0_i32_1 = arith.constant 0 : i32
    return %c0_i32, %c0_i32_0 : i32, i32
  }
  func.func @transform_9(%arg0: i32) -> (i32, i32) {
    %c0_i32 = arith.constant 0 : i32
    %c0_i32_0 = arith.constant 0 : i32
    %c0_i32_1 = arith.constant 0 : i32
    return %c0_i32, %c0_i32_0 : i32, i32
  }
  func.func @transform_10(%arg0: i32) -> (i32, i32) {
    %c0_i32 = arith.constant 0 : i32
    %c0_i32_0 = arith.constant 0 : i32
    %c0_i32_1 = arith.constant 0 : i32
    return %c0_i32, %c0_i32_0 : i32, i32
  }
  func.func @transform_11(%arg0: i32) -> (i32, i32) {
    %c0_i32 = arith.constant 0 : i32
    %c0_i32_0 = arith.constant 0 : i32
    %c0_i32_1 = arith.constant 0 : i32
    return %c0_i32, %c0_i32_0 : i32, i32
  }
  func.func @transform_12(%arg0: i32) -> (i32, i32) {
    %c0_i32 = arith.constant 0 : i32
    %c0_i32_0 = arith.constant 0 : i32
    %c0_i32_1 = arith.constant 0 : i32
    return %c0_i32, %c0_i32_0 : i32, i32
  }
  func.func @transform_13(%arg0: i32) -> (i32, i32, i32) {
    %c0_i32 = arith.constant 0 : i32
    %c0_i32_0 = arith.constant 0 : i32
    %c0_i32_1 = arith.constant 0 : i32
    return %arg0, %c0_i32, %c0_i32_0 : i32, i32, i32
  }
}

</mosaic_0001>

<llo_original>
// kernel: temporal_conv_net_pallas.1
$region0: #{temporal_conv_net_pallas.1}
  #allocation0 [shape = 'u32[]', space=smem, size = 0x4, offset = 0x4, fixed_abs, tag = 'smem constant byte address 0x4 - core index']
  #allocation1 [shape = 'u32[144,128]{1,0:T(1,128)}', space=vmem, size = 0x12000, scoped, tag = 'internal scratch']
  #allocation2 [shape = 'bf16[32,256]{1,0:T(16,128)(2,1)}', space=vmem, size = 0x4000, scoped, tag = 'scratch operand']
  #allocation3 [shape = 'bf16[32,256]{1,0:T(16,128)(2,1)}', space=vmem, size = 0x4000, scoped, tag = 'scratch operand']
  %s0 = inlined_call_operand.vmem [shape: bf16[2,16,256], index: 0, kind: input, shape index: {}]
  %s1 = inlined_call_operand.vmem [shape: bf16[16,48], index: 1, kind: input, shape index: {}]
  %s2 = inlined_call_operand.vmem [shape: f32[16,1], index: 2, kind: input, shape index: {}]
  %s3 = inlined_call_operand.vmem [shape: bf16[16,48], index: 3, kind: input, shape index: {}]
  %s4 = inlined_call_operand.vmem [shape: f32[16,1], index: 4, kind: input, shape index: {}]
  %s5 = inlined_call_operand.vmem [shape: bf16[64,48], index: 5, kind: input, shape index: {}]
  %s6 = inlined_call_operand.vmem [shape: f32[64,1], index: 6, kind: input, shape index: {}]
  %s7 = inlined_call_operand.vmem [shape: bf16[32,96], index: 7, kind: input, shape index: {}]
  %s8 = inlined_call_operand.vmem [shape: f32[32,1], index: 8, kind: input, shape index: {}]
  %s9 = inlined_call_operand.vmem [shape: bf16[32,96], index: 9, kind: input, shape index: {}]
  %s10 = inlined_call_operand.vmem [shape: f32[32,1], index: 10, kind: input, shape index: {}]
  %s11 = inlined_call_operand.vmem [shape: bf16[32,96], index: 11, kind: input, shape index: {}]
  %s12 = inlined_call_operand.vmem [shape: f32[32,1], index: 12, kind: input, shape index: {}]
  %s13 = inlined_call_operand.hbm [shape: f32[4,32,64], index: 13, kind: output, shape index: {}]
  %s14 = sld [smem:[#allocation0]]
  $region85: #{temporal_conv_net_pallas.1} parent=0
    _
  %s16 = ssub.s32 1, %s14
  %s17 = scalar_select 0, %s16, %s14
  $region1: #{temporal_conv_net_pallas.1} parent=0
    #allocation4 [shape = 'u8[65536]{0}', space=vmem, size = 0x10000, scoped, tag = 'output window, operand 0']
    #allocation5 [shape = 's32[2]{0}', space=sflag, size = 0x8, scoped, tag = 'scoped memory for temporal_conv_net_pallas.1']
    %18 = vsyncpa [#allocation5], 0
    %s19 = scalar_lea.sflag [#allocation5], 1
    %20 = vsyncpa %s19, 0
    loop: start=0, step=1, limit=4
    $region2: #{temporal_conv_net_pallas.1} parent=1 // loop_pre_header
      _
    $region3: #{temporal_conv_net_pallas.1} parent=1 // loop_header
      %s22 = sphi 0, %s26
      %p23 = scmp.ge.s32.totalorder %s22, 4
      %s32 = sphi 0, %s34
      %s35 = sphi 0, %s32
      %s36 = sphi 0, %s35
      %s52 = sphi 0, %s36
      %s56 = sphi 0, %s56
      %s58 = sphi 0, %s56
      %s59 = sphi 0, %s58
      %s73 = sphi 0, %s59
      %s77 = sphi 0, %s77
      %s79 = sphi 0, %s77
      %s80 = sphi 0, %s79
      %s94 = sphi 0, %s80
      %s98 = sphi 0, %s98
      %s100 = sphi 0, %s98
      %s101 = sphi 0, %s100
      %s115 = sphi 0, %s101
      %s119 = sphi 0, %s119
      %s121 = sphi 0, %s119
      %s122 = sphi 0, %s121
      %s136 = sphi 0, %s122
      %s140 = sphi 0, %s140
      %s142 = sphi 0, %s140
      %s143 = sphi 0, %s142
      %s157 = sphi 0, %s143
      %s161 = sphi 0, %s161
      %s163 = sphi 0, %s161
      %s164 = sphi 0, %s163
      %s178 = sphi 0, %s164
      %s182 = sphi 0, %s182
      %s184 = sphi 0, %s182
      %s185 = sphi 0, %s184
      %s199 = sphi 0, %s185
      %s203 = sphi 0, %s203
      %s205 = sphi 0, %s203
      %s206 = sphi 0, %s205
      %s220 = sphi 0, %s206
      %s224 = sphi 0, %s224
      %s226 = sphi 0, %s224
      %s227 = sphi 0, %s226
      %s241 = sphi 0, %s227
      %s245 = sphi 0, %s245
      %s247 = sphi 0, %s245
      %s248 = sphi 0, %s247
      %s262 = sphi 0, %s248
      %s266 = sphi 0, %s266
      %s268 = sphi 0, %s266
      %s269 = sphi 0, %s268
      %s283 = sphi 0, %s269
      %s287 = sphi 0, %s287
      %s289 = sphi 0, %s287
      %s290 = sphi 0, %s289
      %s304 = sphi 0, %s290
      %s310 = sphi 0, %s312
      %s313 = sphi 0, %s310
      %s314 = sphi 0, %s313
      %s330 = sphi 0, %s314
    $region4: #{temporal_conv_net_pallas.1} parent=1 // loop_header_branch
      %25 = sbr.rel (%p23) target = $region8
    $region5: #{temporal_conv_net_pallas.1} parent=1 // loop_body
      %s27 = ssub.s32 %s22, 1
      %s28 = ssub.s32 %s22, 2
      %s29 = sadd.s32 %s22, 1
      %s30 = ssub.s32 %s22, %s29
      %p31 = scmp.eq.s32.totalorder %s30, 0
      %s33 = sadd.s32 %s32, 1
      %s34 = scalar_select %p31, %s32, %s33
      %p37 = pneg %p31
      %p38 = scmp.eq.s32.totalorder %s22, 1
      %p39 = por %p37, %p38
      %p40 = scmp.ne.s32.totalorder %s32, %s35
      %p41 = scmp.eq.s32.totalorder %s22, 0
      %p42 = por %p40, %p41
      %p43 = scmp.ne.s32.totalorder %s32, %s35
      %p44 = scmp.eq.s32.totalorder %s27, 1
      %p45 = por %p43, %p44
      %p46 = scmp.ne.s32.totalorder %s35, %s36
      %p47 = scmp.eq.s32.totalorder %s27, 0
      %p48 = por %p46, %p47
      %p49 = scmp.ne.s32.totalorder %s35, %s36
      %p50 = scmp.eq.s32.totalorder %s28, 1
      %p51 = por %p49, %p50
      %p53 = scmp.ne.s32.totalorder %s36, %s52
      %p54 = scmp.eq.s32.totalorder %s28, 0
      %p55 = por %p53, %p54
      %s57 = sadd.s32 %s56, 1
      %p60 = scmp.eq.s32.totalorder %s22, 1
      %p61 = scmp.ne.s32.totalorder %s56, %s58
      %p62 = scmp.eq.s32.totalorder %s22, 0
      %p63 = por %p61, %p62
      %p64 = scmp.ne.s32.totalorder %s56, %s58
      %p65 = scmp.eq.s32.totalorder %s27, 1
      %p66 = por %p64, %p65
      %p67 = scmp.ne.s32.totalorder %s58, %s59
      %p68 = scmp.eq.s32.totalorder %s27, 0
      %p69 = por %p67, %p68
      %p70 = scmp.ne.s32.totalorder %s58, %s59
      %p71 = scmp.eq.s32.totalorder %s28, 1
      %p72 = por %p70, %p71
      %p74 = scmp.ne.s32.totalorder %s59, %s73
      %p75 = scmp.eq.s32.totalorder %s28, 0
      %p76 = por %p74, %p75
      %s78 = sadd.s32 %s77, 1
      %p81 = scmp.eq.s32.totalorder %s22, 1
      %p82 = scmp.ne.s32.totalorder %s77, %s79
      %p83 = scmp.eq.s32.totalorder %s22, 0
      %p84 = por %p82, %p83
      %p85 = scmp.ne.s32.totalorder %s77, %s79
      %p86 = scmp.eq.s32.totalorder %s27, 1
      %p87 = por %p85, %p86
      %p88 = scmp.ne.s32.totalorder %s79, %s80
      %p89 = scmp.eq.s32.totalorder %s27, 0
      %p90 = por %p88, %p89
      %p91 = scmp.ne.s32.totalorder %s79, %s80
      %p92 = scmp.eq.s32.totalorder %s28, 1
      %p93 = por %p91, %p92
      %p95 = scmp.ne.s32.totalorder %s80, %s94
      %p96 = scmp.eq.s32.totalorder %s28, 0
      %p97 = por %p95, %p96
      %s99 = sadd.s32 %s98, 1
      %p102 = scmp.eq.s32.totalorder %s22, 1
      %p103 = scmp.ne.s32.totalorder %s98, %s100
      %p104 = scmp.eq.s32.totalorder %s22, 0
      %p105 = por %p103, %p104
      %p106 = scmp.ne.s32.totalorder %s98, %s100
      %p107 = scmp.eq.s32.totalorder %s27, 1
      %p108 = por %p106, %p107
      %p109 = scmp.ne.s32.totalorder %s100, %s101
      %p110 = scmp.eq.s32.totalorder %s27, 0
      %p111 = por %p109, %p110
      %p112 = scmp.ne.s32.totalorder %s100, %s101
      %p113 = scmp.eq.s32.totalorder %s28, 1
      %p114 = por %p112, %p113
      %p116 = scmp.ne.s32.totalorder %s101, %s115
      %p117 = scmp.eq.s32.totalorder %s28, 0
      %p118 = por %p116, %p117
      %s120 = sadd.s32 %s119, 1
      %p123 = scmp.eq.s32.totalorder %s22, 1
      %p124 = scmp.ne.s32.totalorder %s119, %s121
      %p125 = scmp.eq.s32.totalorder %s22, 0
      %p126 = por %p124, %p125
      %p127 = scmp.ne.s32.totalorder %s119, %s121
      %p128 = scmp.eq.s32.totalorder %s27, 1
      %p129 = por %p127, %p128
      %p130 = scmp.ne.s32.totalorder %s121, %s122
      %p131 = scmp.eq.s32.totalorder %s27, 0
      %p132 = por %p130, %p131
      %p133 = scmp.ne.s32.totalorder %s121, %s122
      %p134 = scmp.eq.s32.totalorder %s28, 1
      %p135 = por %p133, %p134
      %p137 = scmp.ne.s32.totalorder %s122, %s136
      %p138 = scmp.eq.s32.totalorder %s28, 0
      %p139 = por %p137, %p138
      %s141 = sadd.s32 %s140, 1
      %p144 = scmp.eq.s32.totalorder %s22, 1
      %p145 = scmp.ne.s32.totalorder %s140, %s142
      %p146 = scmp.eq.s32.totalorder %s22, 0
      %p147 = por %p145, %p146
      %p148 = scmp.ne.s32.totalorder %s140, %s142
      %p149 = scmp.eq.s32.totalorder %s27, 1
      %p150 = por %p148, %p149
      %p151 = scmp.ne.s32.totalorder %s142, %s143
      %p152 = scmp.eq.s32.totalorder %s27, 0
      %p153 = por %p151, %p152
      %p154 = scmp.ne.s32.totalorder %s142, %s143
      %p155 = scmp.eq.s32.totalorder %s28, 1
      %p156 = por %p154, %p155
      %p158 = scmp.ne.s32.totalorder %s143, %s157
      %p159 = scmp.eq.s32.totalorder %s28, 0
      %p160 = por %p158, %p159
      %s162 = sadd.s32 %s161, 1
      %p165 = scmp.eq.s32.totalorder %s22, 1
      %p166 = scmp.ne.s32.totalorder %s161, %s163
      %p167 = scmp.eq.s32.totalorder %s22, 0
      %p168 = por %p166, %p167
      %p169 = scmp.ne.s32.totalorder %s161, %s163
      %p170 = scmp.eq.s32.totalorder %s27, 1
      %p171 = por %p169, %p170
      %p172 = scmp.ne.s32.totalorder %s163, %s164
      %p173 = scmp.eq.s32.totalorder %s27, 0
      %p174 = por %p172, %p173
      %p175 = scmp.ne.s32.totalorder %s163, %s164
      %p176 = scmp.eq.s32.totalorder %s28, 1
      %p177 = por %p175, %p176
      %p179 = scmp.ne.s32.totalorder %s164, %s178
      %p180 = scmp.eq.s32.totalorder %s28, 0
      %p181 = por %p179, %p180
      %s183 = sadd.s32 %s182, 1
      %p186 = scmp.eq.s32.totalorder %s22, 1
      %p187 = scmp.ne.s32.totalorder %s182, %s184
      %p188 = scmp.eq.s32.totalorder %s22, 0
      %p189 = por %p187, %p188
      %p190 = scmp.ne.s32.totalorder %s182, %s184
      %p191 = scmp.eq.s32.totalorder %s27, 1
      %p192 = por %p190, %p191
      %p193 = scmp.ne.s32.totalorder %s184, %s185
      %p194 = scmp.eq.s32.totalorder %s27, 0
      %p195 = por %p193, %p194
      %p196 = scmp.ne.s32.totalorder %s184, %s185
      %p197 = scmp.eq.s32.totalorder %s28, 1
      %p198 = por %p196, %p197
      %p200 = scmp.ne.s32.totalorder %s185, %s199
      %p201 = scmp.eq.s32.totalorder %s28, 0
      %p202 = por %p200, %p201
      %s204 = sadd.s32 %s203, 1
      %p207 = scmp.eq.s32.totalorder %s22, 1
      %p208 = scmp.ne.s32.totalorder %s203, %s205
      %p209 = scmp.eq.s32.totalorder %s22, 0
      %p210 = por %p208, %p209
      %p211 = scmp.ne.s32.totalorder %s203, %s205
      %p212 = scmp.eq.s32.totalorder %s27, 1
      %p213 = por %p211, %p212
      %p214 = scmp.ne.s32.totalorder %s205, %s206
      %p215 = scmp.eq.s32.totalorder %s27, 0
      %p216 = por %p214, %p215
      %p217 = scmp.ne.s32.totalorder %s205, %s206
      %p218 = scmp.eq.s32.totalorder %s28, 1
      %p219 = por %p217, %p218
      %p221 = scmp.ne.s32.totalorder %s206, %s220
      %p222 = scmp.eq.s32.totalorder %s28, 0
      %p223 = por %p221, %p222
      %s225 = sadd.s32 %s224, 1
      %p228 = scmp.eq.s32.totalorder %s22, 1
      %p229 = scmp.ne.s32.totalorder %s224, %s226
      %p230 = scmp.eq.s32.totalorder %s22, 0
      %p231 = por %p229, %p230
      %p232 = scmp.ne.s32.totalorder %s224, %s226
      %p233 = scmp.eq.s32.totalorder %s27, 1
      %p234 = por %p232, %p233
      %p235 = scmp.ne.s32.totalorder %s226, %s227
      %p236 = scmp.eq.s32.totalorder %s27, 0
      %p237 = por %p235, %p236
      %p238 = scmp.ne.s32.totalorder %s226, %s227
      %p239 = scmp.eq.s32.totalorder %s28, 1
      %p240 = por %p238, %p239
      %p242 = scmp.ne.s32.totalorder %s227, %s241
      %p243 = scmp.eq.s32.totalorder %s28, 0
      %p244 = por %p242, %p243
      %s246 = sadd.s32 %s245, 1
      %p249 = scmp.eq.s32.totalorder %s22, 1
      %p250 = scmp.ne.s32.totalorder %s245, %s247
      %p251 = scmp.eq.s32.totalorder %s22, 0
      %p252 = por %p250, %p251
      %p253 = scmp.ne.s32.totalorder %s245, %s247
      %p254 = scmp.eq.s32.totalorder %s27, 1
      %p255 = por %p253, %p254
      %p256 = scmp.ne.s32.totalorder %s247, %s248
      %p257 = scmp.eq.s32.totalorder %s27, 0
      %p258 = por %p256, %p257
      %p259 = scmp.ne.s32.totalorder %s247, %s248
      %p260 = scmp.eq.s32.totalorder %s28, 1
      %p261 = por %p259, %p260
      %p263 = scmp.ne.s32.totalorder %s248, %s262
      %p264 = scmp.eq.s32.totalorder %s28, 0
      %p265 = por %p263, %p264
      %s267 = sadd.s32 %s266, 1
      %p270 = scmp.eq.s32.totalorder %s22, 1
      %p271 = scmp.ne.s32.totalorder %s266, %s268
      %p272 = scmp.eq.s32.totalorder %s22, 0
      %p273 = por %p271, %p272
      %p274 = scmp.ne.s32.totalorder %s266, %s268
      %p275 = scmp.eq.s32.totalorder %s27, 1
      %p276 = por %p274, %p275
      %p277 = scmp.ne.s32.totalorder %s268, %s269
      %p278 = scmp.eq.s32.totalorder %s27, 0
      %p279 = por %p277, %p278
      %p280 = scmp.ne.s32.totalorder %s268, %s269
      %p281 = scmp.eq.s32.totalorder %s28, 1
      %p282 = por %p280, %p281
      %p284 = scmp.ne.s32.totalorder %s269, %s283
      %p285 = scmp.eq.s32.totalorder %s28, 0
      %p286 = por %p284, %p285
      %s288 = sadd.s32 %s287, 1
      %p291 = scmp.eq.s32.totalorder %s22, 1
      %p292 = scmp.ne.s32.totalorder %s287, %s289
      %p293 = scmp.eq.s32.totalorder %s22, 0
      %p294 = por %p292, %p293
      %p295 = scmp.ne.s32.totalorder %s287, %s289
      %p296 = scmp.eq.s32.totalorder %s27, 1
      %p297 = por %p295, %p296
      %p298 = scmp.ne.s32.totalorder %s289, %s290
      %p299 = scmp.eq.s32.totalorder %s27, 0
      %p300 = por %p298, %p299
      %p301 = scmp.ne.s32.totalorder %s289, %s290
      %p302 = scmp.eq.s32.totalorder %s28, 1
      %p303 = por %p301, %p302
      %p305 = scmp.ne.s32.totalorder %s290, %s304
      %p306 = scmp.eq.s32.totalorder %s28, 0
      %p307 = por %p305, %p306
      %s308 = ssub.s32 %s22, %s29
      %p309 = scmp.eq.s32.totalorder %s308, 0
      %s311 = sadd.s32 %s310, 1
      %s312 = scalar_select %p309, %s310, %s311
      %p315 = pneg %p309
      %p316 = scmp.eq.s32.totalorder %s22, 1
      %p317 = por %p315, %p316
      %p318 = scmp.ne.s32.totalorder %s310, %s313
      %p319 = scmp.eq.s32.totalorder %s22, 0
      %p320 = por %p318, %p319
      %p321 = scmp.ne.s32.totalorder %s310, %s313
      %p322 = scmp.eq.s32.totalorder %s27, 1
      %p323 = por %p321, %p322
      %p324 = scmp.ne.s32.totalorder %s313, %s314
      %p325 = scmp.eq.s32.totalorder %s27, 0
      %p326 = por %p324, %p325
      %p327 = scmp.ne.s32.totalorder %s313, %s314
      %p328 = scmp.eq.s32.totalorder %s28, 1
      %p329 = por %p327, %p328
      %p331 = scmp.ne.s32.totalorder %s314, %s330
      %p332 = scmp.eq.s32.totalorder %s28, 0
      %p333 = por %p331, %p332
      %p334 = scmp.le.s32.totalorder 1, %s22
      %p335 = scmp.lt.s32.totalorder %s22, 3
      %p336 = pnand %p334, %p335
      %p337 = pneg %p336
      // Predicated region
      $region9: #{temporal_conv_net_pallas.1} parent=5 // pred_check
        _
      $region10: #{temporal_conv_net_pallas.1} parent=5 // pred_check_branch
        %339 = sbr.rel (%p336) target = $region12
      $region11: #{temporal_conv_net_pallas.1} parent=5 // pred_region
        %s340 = ssub.s32 %s22, 1
        // Predicated region
        $region13: #{temporal_conv_net_pallas.1} parent=11 // pred_check
          %p341 = pneg %p69
        $region14: #{temporal_conv_net_pallas.1} parent=11 // pred_check_branch
          %343 = sbr.rel (%p341) target = $region16
        $region15: #{temporal_conv_net_pallas.1} parent=11 // pred_region
          _
        $region16: #{temporal_conv_net_pallas.1} parent=11 // pred_fallthru
          _
        // Predicated region
        $region17: #{temporal_conv_net_pallas.1} parent=11 // pred_check
          %p344 = pneg %p90
        $region18: #{temporal_conv_net_pallas.1} parent=11 // pred_check_branch
          %346 = sbr.rel (%p344) target = $region20
        $region19: #{temporal_conv_net_pallas.1} parent=11 // pred_region
          _
        $region20: #{temporal_conv_net_pallas.1} parent=11 // pred_fallthru
          _
        // Predicated region
        $region21: #{temporal_conv_net_pallas.1} parent=11 // pred_check
          %p347 = pneg %p111
        $region22: #{temporal_conv_net_pallas.1} parent=11 // pred_check_branch
          %349 = sbr.rel (%p347) target = $region24
        $region23: #{temporal_conv_net_pallas.1} parent=11 // pred_region
          _
        $region24: #{temporal_conv_net_pallas.1} parent=11 // pred_fallthru
          _
        // Predicated region
        $region25: #{temporal_conv_net_pallas.1} parent=11 // pred_check
          %p350 = pneg %p132
        $region26: #{temporal_conv_net_pallas.1} parent=11 // pred_check_branch
          %352 = sbr.rel (%p350) target = $region28
        $region27: #{temporal_conv_net_pallas.1} parent=11 // pred_region
          _
        $region28: #{temporal_conv_net_pallas.1} parent=11 // pred_fallthru
          _
        // Predicated region
        $region29: #{temporal_conv_net_pallas.1} parent=11 // pred_check
          %p353 = pneg %p153
        $region30: #{temporal_conv_net_pallas.1} parent=11 // pred_check_branch
          %355 = sbr.rel (%p353) target = $region32
        $region31: #{temporal_conv_net_pallas.1} parent=11 // pred_region
          _
        $region32: #{temporal_conv_net_pallas.1} parent=11 // pred_fallthru
          _
        // Predicated region
        $region33: #{temporal_conv_net_pallas.1} parent=11 // pred_check
          %p356 = pneg %p174
        $region34: #{temporal_conv_net_pallas.1} parent=11 // pred_check_branch
          %358 = sbr.rel (%p356) target = $region36
        $region35: #{temporal_conv_net_pallas.1} parent=11 // pred_region
          _
        $region36: #{temporal_conv_net_pallas.1} parent=11 // pred_fallthru
          _
        // Predicated region
        $region37: #{temporal_conv_net_pallas.1} parent=11 // pred_check
          %p359 = pneg %p195
        $region38: #{temporal_conv_net_pallas.1} parent=11 // pred_check_branch
          %361 = sbr.rel (%p359) target = $region40
        $region39: #{temporal_conv_net_pallas.1} parent=11 // pred_region
          _
        $region40: #{temporal_conv_net_pallas.1} parent=11 // pred_fallthru
          _
        // Predicated region
        $region41: #{temporal_conv_net_pallas.1} parent=11 // pred_check
          %p362 = pneg %p216
        $region42: #{temporal_conv_net_pallas.1} parent=11 // pred_check_branch
          %364 = sbr.rel (%p362) target = $region44
        $region43: #{temporal_conv_net_pallas.1} parent=11 // pred_region
          _
        $region44: #{temporal_conv_net_pallas.1} parent=11 // pred_fallthru
          _
        // Predicated region
        $region45: #{temporal_conv_net_pallas.1} parent=11 // pred_check
          %p365 = pneg %p237
        $region46: #{temporal_conv_net_pallas.1} parent=11 // pred_check_branch
          %367 = sbr.rel (%p365) target = $region48
        $region47: #{temporal_conv_net_pallas.1} parent=11 // pred_region
          _
        $region48: #{temporal_conv_net_pallas.1} parent=11 // pred_fallthru
          _
        // Predicated region
        $region49: #{temporal_conv_net_pallas.1} parent=11 // pred_check
          %p368 = pneg %p258
        $region50: #{temporal_conv_net_pallas.1} parent=11 // pred_check_branch
          %370 = sbr.rel (%p368) target = $region52
        $region51: #{temporal_conv_net_pallas.1} parent=11 // pred_region
          _
        $region52: #{temporal_conv_net_pallas.1} parent=11 // pred_fallthru
          _
        // Predicated region
        $region53: #{temporal_conv_net_pallas.1} parent=11 // pred_check
          %p371 = pneg %p279
        $region54: #{temporal_conv_net_pallas.1} parent=11 // pred_check_branch
          %373 = sbr.rel (%p371) target = $region56
        $region55: #{temporal_conv_net_pallas.1} parent=11 // pred_region
          _
        $region56: #{temporal_conv_net_pallas.1} parent=11 // pred_fallthru
          _
        // Predicated region
        $region57: #{temporal_conv_net_pallas.1} parent=11 // pred_check
          %p374 = pneg %p300
        $region58: #{temporal_conv_net_pallas.1} parent=11 // pred_check_branch
          %376 = sbr.rel (%p374) target = $region60
        $region59: #{temporal_conv_net_pallas.1} parent=11 // pred_region
          _
        $region60: #{temporal_conv_net_pallas.1} parent=11 // pred_fallthru
          _
      $region12: #{temporal_conv_net_pallas.1} parent=5 // pred_fallthru
        _
      %p377 = scmp.lt.s32.totalorder %s22, 2
      // Predicated region
      $region61: #{temporal_conv_net_pallas.1} parent=5 // pred_check
        %p378 = pneg %p377
      $region62: #{temporal_conv_net_pallas.1} parent=5 // pred_check_branch
        %380 = sbr.rel (%p378) target = $region64
      $region63: #{temporal_conv_net_pallas.1} parent=5 // pred_region
        // Predicated region
        $region65: #{temporal_conv_net_pallas.1} parent=63 // pred_check
          %p381 = pneg %p42
        $region66: #{temporal_conv_net_pallas.1} parent=63 // pred_check_branch
          %383 = sbr.rel (%p381) target = $region68
        $region67: #{temporal_conv_net_pallas.1} parent=63 // pred_region
          %p384 = scmp.lt.s32.totalorder %s22, 1
          %s385 = scalar_select %p384, %s22, 1
          %s386 = smul.addr %s385, 4
          %s387 = smul.addr %s386, 4
          %s388 = scalar_lea.vmem %s0, %s387
        $region68: #{temporal_conv_net_pallas.1} parent=63 // pred_fallthru
          _
      $region64: #{temporal_conv_net_pallas.1} parent=5 // pred_fallthru
        _
      %p389 = scmp.le.s32.totalorder 1, %s22
      %p390 = scmp.lt.s32.totalorder %s22, 3
      %p391 = pnand %p389, %p390
      %p392 = pneg %p391
      // Predicated region
      $region69: #{temporal_conv_net_pallas.1} parent=5 // pred_check
        _
      $region70: #{temporal_conv_net_pallas.1} parent=5 // pred_check_branch
        %394 = sbr.rel (%p391) target = $region72
      $region71: #{temporal_conv_net_pallas.1} parent=5 // pred_region
        %s395 = ssub.s32 %s22, 1
        %p396 = scmp.lt.s32.totalorder %s27, 1
        %s397 = scalar_select %p396, %s27, 1
        %s398 = smul.addr %s397, 4
        %s399 = smul.addr %s398, 4
        %s400 = scalar_lea.vmem %s0, %s399
        %p401 = pneg %p48
        %p402 = pneg %p45
        %p403 = pneg %p69
        %p404 = pneg %p66
        %p405 = pneg %p90
        %p406 = pneg %p87
        %p407 = pneg %p111
        %p408 = pneg %p108
        %p409 = pneg %p132
        %p410 = pneg %p129
        %p411 = pneg %p153
        %p412 = pneg %p150
        %p413 = pneg %p174
        %p414 = pneg %p171
        %p415 = pneg %p195
        %p416 = pneg %p192
        %p417 = pneg %p216
        %p418 = pneg %p213
        %p419 = pneg %p237
        %p420 = pneg %p234
        %p421 = pneg %p258
        %p422 = pneg %p255
        %p423 = pneg %p279
        %p424 = pneg %p276
        %p425 = pneg %p300
        %p426 = pneg %p297
        %p427 = pneg %p326
        %p428 = pneg %p323
        %s429 = sand.u32 %s313, 1
        %s430 = scalar_lea.sflag [#allocation5], %s429
        %s431 = sand.u32 %s313, 1
        %s432 = smul.addr %s431, 64
        %s433 = scalar_lea.vmem [#allocation4], %s432
        %p434 = scmp.lt.s32.totalorder %s27, 1
        %s435 = scalar_select %p434, %s27, 1
        %s436 = smul.addr %s435, 4
        %s437 = smul.addr %s436, 4
        %s438 = scalar_lea.vmem %s0, %s437
        %s439 = smul.u32 2, %s27
        %vm441 = vcmask 31744
        %442 = vst.msk [vmem:[#allocation2] sm:$0xff] %vm441, 0
        %443 = vst.msk [vmem:[#allocation2 + $0x10] sm:$0xff] %vm441, 0
        %vm444 = vcmask 1048544
        %445 = vst.msk [vmem:[#allocation2 + $0x8] sm:$0xff] %vm444, 0
        %446 = vst.msk [vmem:[#allocation2 + $0x18] sm:$0xff] %vm444, 0
        %447 = vst.msk [vmem:[#allocation3] sm:$0xff] %vm441, 0
        %448 = vst.msk [vmem:[#allocation3 + $0x10] sm:$0xff] %vm441, 0
        %449 = vst.msk [vmem:[#allocation3 + $0x8] sm:$0xff] %vm444, 0
        %450 = vst.msk [vmem:[#allocation3 + $0x18] sm:$0xff] %vm444, 0
        %v451 = vld [vmem:[%s438] sm:$0xff]
        %v452 = vld [vmem:[%s438 + $0x8] sm:$0xff]
        %v455 = vunpack.c.l.b16 %v451
        %v456 = vunpack.c.h.b16 %v451
        %v457 = vunpack.c.l.b16 %v452
        %v458 = vunpack.c.h.b16 %v452
        %v459 = vpack.c.b16 %v457, %v455
        %v460 = vpack.c.b16 %v458, %v456
        %463 = vst [vmem:[#allocation2] sm:$0xff] %v459
        %464 = vst [vmem:[#allocation2 + $0x8] sm:$0xff] %v460
        %v465 = vlaneseq
        %v466 = vand.u32 %v465, 127
        %v467 = vadd.s32 %v466, 128
        %vm468 = vcmp.ge.s32.totalorder %v466, 0
        %vm469 = vcmp.ge.s32.totalorder %v467, 0
        %vm470 = vcmp.lt.s32.totalorder %v466, 64
        %vm471 = vcmp.lt.s32.totalorder %v467, 64
        %vm472 = vmand %vm468, %vm470
        %vm473 = vmand %vm469, %vm471
        %vm474 = vcmp.ge.s32.totalorder %v466, 128
        %vm475 = vcmp.ge.s32.totalorder %v467, 128
        %vm476 = vcmp.lt.s32.totalorder %v466, 192
        %vm477 = vcmp.lt.s32.totalorder %v467, 192
        %vm478 = vmand %vm474, %vm476
        %vm479 = vmand %vm475, %vm477
        %vm480 = vmor %vm472, %vm478
        %vm481 = vmor %vm473, %vm479
        %v482 = vld [vmem:[#allocation2] sm:$0xff]
        %v483 = vld [vmem:[#allocation2 + $0x8] sm:$0xff]
        %486 = vrot.lane.b32.xlu0 %v482, 127
        %v487 = vpop.permute.xlu0 %486
        %488 = vrot.lane.b32.xlu0 %v483, 127
        %v489 = vpop.permute.xlu0 %488
        %vm490 = vcmask 1039360
        %v491 = vsel %vm490, %v487, %v489
        %492 = vrot.lane.b32.xlu0 %v482, 126
        %v493 = vpop.permute.xlu0 %492
        %494 = vrot.lane.b32.xlu0 %v483, 126
        %v495 = vpop.permute.xlu0 %494
        %vm496 = vcmask 1031168
        %v497 = vsel %vm496, %v493, %v495
        %v498 = vld [vmem:[%s1] sm:$0xf]
        %v499 = vld [vmem:[%s1 + $0x4] sm:$0xf]
        %v500 = vld [vmem:[%s2] sm:$0xff]
        %v501 = vld [vmem:[%s2 + $0x8] sm:$0xff]
        %503 = vset.pattern.permute.xlu0 0
        %504 = vperm.xlu0 %503, %v500
        %v505 = vpop.permute.xlu0 %504
        %508 = vset.pattern.permute.xlu0 0
        %509 = vperm.xlu0 %508, %v501
        %v510 = vpop.permute.xlu0 %509
        %v514 = vunpack.c.l.b16 %v498
        %v515 = vunpack.c.l.b16 %v499
        %v516 = vpack.c.b16 %v515, %v514
        %517 = vrot.lane.b32.xlu0 %v482, 125
        %v518 = vpop.permute.xlu0 %517
        %519 = vrot.lane.b32.xlu0 %v483, 125
        %v520 = vpop.permute.xlu0 %519
        %521 = vrot.lane.b32.xlu0 %v491, 125
        %v522 = vpop.permute.xlu0 %521
        %523 = vrot.lane.b32.xlu0 %v489, 125
        %v524 = vpop.permute.xlu0 %523
        %525 = vrot.lane.b32.xlu0 %v497, 125
        %v526 = vpop.permute.xlu0 %525
        %527 = vrot.lane.b32.xlu0 %v495, 125
        %v528 = vpop.permute.xlu0 %527
        %vm529 = vcmask 1022976
        %v530 = vsel %vm529, %v518, %v520
        %v531 = vsel %vm529, %v522, %v524
        %v532 = vsel %vm529, %v526, %v528
        %vm539 = vcmask 392192
        %v541 = vsel %vm539, %v516, 0
        %543 = vmatprep.subr.bf16.mxu0 %v520
        %544 = vmatpush1.bf16.msra.mxu0 %v530
        %545 = vmatprep.subr.bf16.mxu0 %v524
        %546 = vmatpush1.bf16.msra.mxu0 %v531
        %547 = vmatprep.subr.bf16.mxu0 %v528
        %548 = vmatpush1.bf16.msra.mxu0 %v532
        %549 = vmatprep.subr.bf16.mxu0 0
        %550 = vmatpush1.bf16.msra.mxu0 0
        %551 = vmatprep.subr.bf16.mxu0 0
        %552 = vmatpush1.bf16.msra.mxu0 0
        %553 = vmatprep.subr.bf16.mxu0 0
        %554 = vmatpush1.bf16.msra.mxu0 0
        %555 = vmatprep.subr.bf16.mxu0 0
        %556 = vmatpush1.bf16.msra.mxu0 0
        %557 = vmatprep.subr.bf16.mxu0 0
        %558 = vmatpush1.bf16.msra.mxu0 0
        %559 = vmatprep.subr.bf16.mxu0 0
        %560 = vmatpush1.bf16.msra.mxu0 0
        %561 = vmatprep.subr.bf16.mxu0 0
        %562 = vmatpush1.bf16.msra.mxu0 0
        %563 = vmatprep.subr.bf16.mxu0 0
        %564 = vmatpush1.bf16.msra.mxu0 0
        %565 = vmatprep.subr.bf16.mxu0 0
        %566 = vmatpush1.bf16.msra.mxu0 0
        %567 = vmatprep.subr.bf16.mxu0 0
        %568 = vmatpush1.bf16.msra.mxu0 0
        %569 = vmatprep.subr.bf16.mxu0 0
        %570 = vmatpush1.bf16.msra.mxu0 0
        %571 = vmatprep.subr.bf16.mxu0 0
        %572 = vmatpush1.bf16.msra.mxu0 0
        %573 = vmatprep.subr.bf16.mxu0 0
        %574 = vmatpush1.bf16.msra.mxu0 0
        %575 = vmatprep.mubr.bf16.mxu0 0
        %576 = vmatmul.mubr.bf16.gmra.mrb[0].mxu0 %v541
        %v577 = vpop.f32.mrb[0].mxu0
        %v578 = vadd.f32 %v505, %v577
        %v579 = vpop.f32.mrb[0].mxu0
        %v580 = vadd.f32 %v505, %v579
        %v581 = vpop.f32.mrb[0].mxu0
        %v582 = vadd.f32 %v510, %v581
        %v583 = vpop.f32.mrb[0].mxu0
        %v584 = vadd.f32 %v510, %v583
        %585 = vdwg.mxu0
        %v586 = vmax.f32 %v578, 0.0
        %v587 = vmax.f32 %v580, 0.0
        %v588 = vmax.f32 %v582, 0.0
        %v589 = vmax.f32 %v584, 0.0
        %v590 = vunpack.c.l.bf16 %v482
        %v591 = vunpack.c.l.bf16 %v483
        %v592 = vunpack.c.h.bf16 %v482
        %v593 = vunpack.c.h.bf16 %v483
        %v594 = vsel %vm480, 1, 0
        %v595 = vsel %vm481, 1, 0
        %vm596 = vcmp.eq.s32.totalorder %v594, 1
        %vm597 = vcmp.eq.s32.totalorder %v595, 1
        %v598 = vsel %vm596, %v586, 0.0
        %v599 = vsel %vm597, %v587, 0.0
        %v600 = vsel %vm596, %v588, 0.0
        %v601 = vsel %vm597, %v589, 0.0
        %v602 = vpack.c.bf16 %v600, %v598
        %v603 = vpack.c.bf16 %v601, %v599
        %606 = vrot.lane.b32.xlu0 %v602, 4
        %v607 = vpop.permute.xlu0 %606
        %608 = vrot.lane.b32.xlu0 %v603, 4
        %v609 = vpop.permute.xlu0 %608
        %vm610 = vcmask 31744
        %v611 = vsel %vm610, %v607, %v609
        %vm614 = vcmask 1047584
        %615 = vst.msk [vmem:[#allocation3] sm:$0xff] %vm614, %v607
        %vm616 = vcmask 1014784
        %617 = vst.msk [vmem:[#allocation3 + $0x8] sm:$0xff] %vm616, %v611
        %v618 = vld [vmem:[#allocation3] sm:$0xff]
        %v619 = vld [vmem:[#allocation3 + $0x8] sm:$0xff]
        %622 = vrot.lane.b32.xlu0 %v618, 127
        %v623 = vpop.permute.xlu0 %622
        %624 = vrot.lane.b32.xlu0 %v619, 127
        %v625 = vpop.permute.xlu0 %624
        %v626 = vsel %vm490, %v623, %v625
        %627 = vrot.lane.b32.xlu0 %v618, 126
        %v628 = vpop.permute.xlu0 %627
        %629 = vrot.lane.b32.xlu0 %v619, 126
        %v630 = vpop.permute.xlu0 %629
        %v631 = vsel %vm496, %v628, %v630
        %v632 = vld [vmem:[%s3] sm:$0xf]
        %v633 = vld [vmem:[%s3 + $0x4] sm:$0xf]
        %v634 = vld [vmem:[%s4] sm:$0xff]
        %v635 = vld [vmem:[%s4 + $0x8] sm:$0xff]
        %637 = vset.pattern.permute.xlu0 0
        %638 = vperm.xlu0 %637, %v634
        %v639 = vpop.permute.xlu0 %638
        %642 = vset.pattern.permute.xlu0 0
        %643 = vperm.xlu0 %642, %v635
        %v644 = vpop.permute.xlu0 %643
        %v648 = vunpack.c.l.b16 %v632
        %v649 = vunpack.c.l.b16 %v633
        %v650 = vpack.c.b16 %v649, %v648
        %651 = vrot.lane.b32.xlu0 %v618, 125
        %v652 = vpop.permute.xlu0 %651
        %653 = vrot.lane.b32.xlu0 %v619, 125
        %v654 = vpop.permute.xlu0 %653
        %655 = vrot.lane.b32.xlu0 %v626, 125
        %v656 = vpop.permute.xlu0 %655
        %657 = vrot.lane.b32.xlu0 %v625, 125
        %v658 = vpop.permute.xlu0 %657
        %659 = vrot.lane.b32.xlu0 %v631, 125
        %v660 = vpop.permute.xlu0 %659
        %661 = vrot.lane.b32.xlu0 %v630, 125
        %v662 = vpop.permute.xlu0 %661
        %v663 = vsel %vm529, %v652, %v654
        %v664 = vsel %vm529, %v656, %v658
        %v665 = vsel %vm529, %v660, %v662
        %v673 = vsel %vm539, %v650, 0
        %675 = vmatprep.subr.bf16.mxu0 %v654
        %676 = vmatpush1.bf16.msra.mxu0 %v663
        %677 = vmatprep.subr.bf16.mxu0 %v658
        %678 = vmatpush1.bf16.msra.mxu0 %v664
        %679 = vmatprep.subr.bf16.mxu0 %v662
        %680 = vmatpush1.bf16.msra.mxu0 %v665
        %681 = vmatprep.subr.bf16.mxu0 0
        %682 = vmatpush1.bf16.msra.mxu0 0
        %683 = vmatprep.subr.bf16.mxu0 0
        %684 = vmatpush1.bf16.msra.mxu0 0
        %685 = vmatprep.subr.bf16.mxu0 0
        %686 = vmatpush1.bf16.msra.mxu0 0
        %687 = vmatprep.subr.bf16.mxu0 0
        %688 = vmatpush1.bf16.msra.mxu0 0
        %689 = vmatprep.subr.bf16.mxu0 0
        %690 = vmatpush1.bf16.msra.mxu0 0
        %691 = vmatprep.subr.bf16.mxu0 0
        %692 = vmatpush1.bf16.msra.mxu0 0
        %693 = vmatprep.subr.bf16.mxu0 0
        %694 = vmatpush1.bf16.msra.mxu0 0
        %695 = vmatprep.subr.bf16.mxu0 0
        %696 = vmatpush1.bf16.msra.mxu0 0
        %697 = vmatprep.subr.bf16.mxu0 0
        %698 = vmatpush1.bf16.msra.mxu0 0
        %699 = vmatprep.subr.bf16.mxu0 0
        %700 = vmatpush1.bf16.msra.mxu0 0
        %701 = vmatprep.subr.bf16.mxu0 0
        %702 = vmatpush1.bf16.msra.mxu0 0
        %703 = vmatprep.subr.bf16.mxu0 0
        %704 = vmatpush1.bf16.msra.mxu0 0
        %705 = vmatprep.subr.bf16.mxu0 0
        %706 = vmatpush1.bf16.msra.mxu0 0
        %707 = vmatprep.mubr.bf16.mxu0 0
        %708 = vmatmul.mubr.bf16.gmra.mrb[0].mxu0 %v673
        %v709 = vpop.f32.mrb[0].mxu0
        %v710 = vadd.f32 %v639, %v709
        %v711 = vpop.f32.mrb[0].mxu0
        %v712 = vadd.f32 %v639, %v711
        %v713 = vpop.f32.mrb[0].mxu0
        %v714 = vadd.f32 %v644, %v713
        %v715 = vpop.f32.mrb[0].mxu0
        %v716 = vadd.f32 %v644, %v715
        %717 = vdwg.mxu0
        %v718 = vmax.f32 %v710, 0.0
        %v719 = vmax.f32 %v712, 0.0
        %v720 = vmax.f32 %v714, 0.0
        %v721 = vmax.f32 %v716, 0.0
        %726 = vrot.lane.b32.xlu0 %v590, 124
        %v727 = vpop.permute.xlu0 %726
        %728 = vrot.lane.b32.xlu0 %v591, 124
        %v729 = vpop.permute.xlu0 %728
        %730 = vrot.lane.b32.xlu0 %v592, 124
        %v731 = vpop.permute.xlu0 %730
        %732 = vrot.lane.b32.xlu0 %v593, 124
        %v733 = vpop.permute.xlu0 %732
        %v734 = vsel %vm616, %v727, %v729
        %v735 = vsel %vm616, %v731, %v733
        %v740 = vadd.f32 %v718, %v734
        %v741 = vadd.f32 %v719, %v729
        %v742 = vadd.f32 %v720, %v735
        %v743 = vadd.f32 %v721, %v733
        %v744 = vmax.f32 %v740, 0.0
        %v745 = vmax.f32 %v741, 0.0
        %v746 = vmax.f32 %v742, 0.0
        %v747 = vmax.f32 %v743, 0.0
        %v748 = vsel %vm596, %v744, 0.0
        %v749 = vsel %vm597, %v745, 0.0
        %v750 = vsel %vm596, %v746, 0.0
        %v751 = vsel %vm597, %v747, 0.0
        %v752 = vpack.c.bf16 %v750, %v748
        %v753 = vpack.c.bf16 %v751, %v749
        %756 = vrot.lane.b32.xlu0 %v752, 4
        %v757 = vpop.permute.xlu0 %756
        %758 = vrot.lane.b32.xlu0 %v753, 4
        %v759 = vpop.permute.xlu0 %758
        %v760 = vsel %vm610, %v757, %v759
        %763 = vst.msk [vmem:[#allocation2] sm:$0xff] %vm614, %v757
        %764 = vst.msk [vmem:[#allocation2 + $0x8] sm:$0xff] %vm616, %v760
        %v765 = vld [vmem:[#allocation2] sm:$0xff]
        %v766 = vld [vmem:[#allocation2 + $0x8] sm:$0xff]
        %769 = vrot.lane.b32.xlu0 %v765, 126
        %v770 = vpop.permute.xlu0 %769
        %771 = vrot.lane.b32.xlu0 %v766, 126
        %v772 = vpop.permute.xlu0 %771
        %v773 = vsel %vm496, %v770, %v772
        %774 = vrot.lane.b32.xlu0 %v765, 124
        %v775 = vpop.permute.xlu0 %774
        %776 = vrot.lane.b32.xlu0 %v766, 124
        %v777 = vpop.permute.xlu0 %776
        %vm778 = vcmask 1014784
        %v779 = vsel %vm778, %v775, %v777
        %v780 = vld [vmem:[%s5] sm:$0xf]
        %v781 = vld [vmem:[%s5 + $0x4] sm:$0xf]
        %v782 = vld [vmem:[%s5 + $0x8] sm:$0xf]
        %v783 = vld [vmem:[%s5 + $0xc] sm:$0xf]
        %v784 = vld [vmem:[%s5 + $0x10] sm:$0xf]
        %v785 = vld [vmem:[%s5 + $0x14] sm:$0xf]
        %v786 = vld [vmem:[%s5 + $0x18] sm:$0xf]
        %v787 = vld [vmem:[%s5 + $0x1c] sm:$0xf]
        %v788 = vld [vmem:[%s6] sm:$0xff]
        %v789 = vld [vmem:[%s6 + $0x8] sm:$0xff]
        %v790 = vld [vmem:[%s6 + $0x10] sm:$0xff]
        %v791 = vld [vmem:[%s6 + $0x18] sm:$0xff]
        %v792 = vld [vmem:[%s6 + $0x20] sm:$0xff]
        %v793 = vld [vmem:[%s6 + $0x28] sm:$0xff]
        %v794 = vld [vmem:[%s6 + $0x30] sm:$0xff]
        %v795 = vld [vmem:[%s6 + $0x38] sm:$0xff]
        %797 = vset.pattern.permute.xlu0 0
        %798 = vperm.xlu0 %797, %v788
        %v799 = vpop.permute.xlu0 %798
        %802 = vset.pattern.permute.xlu0 0
        %803 = vperm.xlu0 %802, %v789
        %v804 = vpop.permute.xlu0 %803
        %807 = vset.pattern.permute.xlu0 0
        %808 = vperm.xlu0 %807, %v790
        %v809 = vpop.permute.xlu0 %808
        %812 = vset.pattern.permute.xlu0 0
        %813 = vperm.xlu0 %812, %v791
        %v814 = vpop.permute.xlu0 %813
        %817 = vset.pattern.permute.xlu0 0
        %818 = vperm.xlu0 %817, %v792
        %v819 = vpop.permute.xlu0 %818
        %822 = vset.pattern.permute.xlu0 0
        %823 = vperm.xlu0 %822, %v793
        %v824 = vpop.permute.xlu0 %823
        %827 = vset.pattern.permute.xlu0 0
        %828 = vperm.xlu0 %827, %v794
        %v829 = vpop.permute.xlu0 %828
        %832 = vset.pattern.permute.xlu0 0
        %833 = vperm.xlu0 %832, %v795
        %v834 = vpop.permute.xlu0 %833
        %v844 = vunpack.c.l.b16 %v780
        %v845 = vunpack.c.l.b16 %v781
        %v846 = vunpack.c.l.b16 %v782
        %v847 = vunpack.c.l.b16 %v783
        %v848 = vunpack.c.l.b16 %v784
        %v849 = vunpack.c.l.b16 %v785
        %v850 = vunpack.c.l.b16 %v786
        %v851 = vunpack.c.l.b16 %v787
        %v852 = vpack.c.b16 %v845, %v844
        %v853 = vpack.c.b16 %v847, %v846
        %v854 = vpack.c.b16 %v849, %v848
        %v855 = vpack.c.b16 %v851, %v850
        %856 = vrot.lane.b32.xlu0 %v773, 126
        %v857 = vpop.permute.xlu0 %856
        %858 = vrot.lane.b32.xlu0 %v772, 126
        %v859 = vpop.permute.xlu0 %858
        %860 = vrot.lane.b32.xlu0 %v779, 126
        %v861 = vpop.permute.xlu0 %860
        %862 = vrot.lane.b32.xlu0 %v777, 126
        %v863 = vpop.permute.xlu0 %862
        %v864 = vsel %vm496, %v857, %v859
        %v865 = vsel %vm496, %v861, %v863
        %v873 = vsel %vm539, %v852, 0
        %v876 = vsel %vm539, %v853, 0
        %v879 = vsel %vm539, %v854, 0
        %v882 = vsel %vm539, %v855, 0
        %884 = vmatprep.subr.bf16.mxu0 %v772
        %885 = vmatpush1.bf16.msra.mxu0 %v773
        %886 = vmatprep.subr.bf16.mxu0 %v859
        %887 = vmatpush1.bf16.msra.mxu0 %v864
        %888 = vmatprep.subr.bf16.mxu0 %v863
        %889 = vmatpush1.bf16.msra.mxu0 %v865
        %890 = vmatprep.subr.bf16.mxu0 0
        %891 = vmatpush1.bf16.msra.mxu0 0
        %892 = vmatprep.subr.bf16.mxu0 0
        %893 = vmatpush1.bf16.msra.mxu0 0
        %894 = vmatprep.subr.bf16.mxu0 0
        %895 = vmatpush1.bf16.msra.mxu0 0
        %896 = vmatprep.subr.bf16.mxu0 0
        %897 = vmatpush1.bf16.msra.mxu0 0
        %898 = vmatprep.subr.bf16.mxu0 0
        %899 = vmatpush1.bf16.msra.mxu0 0
        %900 = vmatprep.subr.bf16.mxu0 0
        %901 = vmatpush1.bf16.msra.mxu0 0
        %902 = vmatprep.subr.bf16.mxu0 0
        %903 = vmatpush1.bf16.msra.mxu0 0
        %904 = vmatprep.subr.bf16.mxu0 0
        %905 = vmatpush1.bf16.msra.mxu0 0
        %906 = vmatprep.subr.bf16.mxu0 0
        %907 = vmatpush1.bf16.msra.mxu0 0
        %908 = vmatprep.subr.bf16.mxu0 0
        %909 = vmatpush1.bf16.msra.mxu0 0
        %910 = vmatprep.subr.bf16.mxu0 0
        %911 = vmatpush1.bf16.msra.mxu0 0
        %912 = vmatprep.subr.bf16.mxu0 0
        %913 = vmatpush1.bf16.msra.mxu0 0
        %914 = vmatprep.subr.bf16.mxu0 0
        %915 = vmatpush1.bf16.msra.mxu0 0
        %916 = vmatprep.mubr.bf16.mxu0 0
        %917 = vmatmul.mubr.bf16.gmra.mrb[0].mxu0 %v873
        %v918 = vpop.f32.mrb[0].mxu0
        %v919 = vadd.f32 %v799, %v918
        %v920 = vpop.f32.mrb[0].mxu0
        %v921 = vadd.f32 %v799, %v920
        %v922 = vpop.f32.mrb[0].mxu0
        %v923 = vadd.f32 %v804, %v922
        %v924 = vpop.f32.mrb[0].mxu0
        %v925 = vadd.f32 %v804, %v924
        %926 = vmatprep.mubr.bf16.mxu0 0
        %927 = vmatmul.mubr.bf16.gmra.mrb[0].mxu0 %v876
        %v928 = vpop.f32.mrb[0].mxu0
        %v929 = vadd.f32 %v809, %v928
        %v930 = vpop.f32.mrb[0].mxu0
        %v931 = vadd.f32 %v809, %v930
        %v932 = vpop.f32.mrb[0].mxu0
        %v933 = vadd.f32 %v814, %v932
        %v934 = vpop.f32.mrb[0].mxu0
        %v935 = vadd.f32 %v814, %v934
        %936 = vmatprep.mubr.bf16.mxu0 0
        %937 = vmatmul.mubr.bf16.gmra.mrb[0].mxu0 %v879
        %v938 = vpop.f32.mrb[0].mxu0
        %v939 = vadd.f32 %v819, %v938
        %v940 = vpop.f32.mrb[0].mxu0
        %v941 = vadd.f32 %v819, %v940
        %v942 = vpop.f32.mrb[0].mxu0
        %v943 = vadd.f32 %v824, %v942
        %v944 = vpop.f32.mrb[0].mxu0
        %v945 = vadd.f32 %v824, %v944
        %946 = vmatprep.mubr.bf16.mxu0 0
        %947 = vmatmul.mubr.bf16.gmra.mrb[0].mxu0 %v882
        %v948 = vpop.f32.mrb[0].mxu0
        %v949 = vadd.f32 %v829, %v948
        %v950 = vpop.f32.mrb[0].mxu0
        %v951 = vadd.f32 %v829, %v950
        %v952 = vpop.f32.mrb[0].mxu0
        %v953 = vadd.f32 %v834, %v952
        %v954 = vpop.f32.mrb[0].mxu0
        %v955 = vadd.f32 %v834, %v954
        %956 = vdwg.mxu0
        %v957 = vmax.f32 %v919, 0.0
        %v958 = vmax.f32 %v921, 0.0
        %v959 = vmax.f32 %v923, 0.0
        %v960 = vmax.f32 %v925, 0.0
        %v961 = vmax.f32 %v929, 0.0
        %v962 = vmax.f32 %v931, 0.0
        %v963 = vmax.f32 %v933, 0.0
        %v964 = vmax.f32 %v935, 0.0
        %v965 = vsel %vm596, %v957, 0.0
        %v966 = vsel %vm597, %v958, 0.0
        %v967 = vsel %vm596, %v959, 0.0
        %v968 = vsel %vm597, %v960, 0.0
        %v969 = vsel %vm596, %v961, 0.0
        %v970 = vsel %vm597, %v962, 0.0
        %v971 = vsel %vm596, %v963, 0.0
        %v972 = vsel %vm597, %v964, 0.0
        %v973 = vpack.c.bf16 %v967, %v965
        %v974 = vpack.c.bf16 %v968, %v966
        %v975 = vpack.c.bf16 %v971, %v969
        %v976 = vpack.c.bf16 %v972, %v970
        %981 = vrot.lane.b32.xlu0 %v973, 4
        %v982 = vpop.permute.xlu0 %981
        %983 = vrot.lane.b32.xlu0 %v974, 4
        %v984 = vpop.permute.xlu0 %983
        %985 = vrot.lane.b32.xlu0 %v975, 4
        %v986 = vpop.permute.xlu0 %985
        %987 = vrot.lane.b32.xlu0 %v976, 4
        %v988 = vpop.permute.xlu0 %987
        %v989 = vsel %vm610, %v982, %v984
        %v990 = vsel %vm610, %v986, %v988
        %995 = vst.msk [vmem:[#allocation3] sm:$0xff] %vm614, %v982
        %996 = vst.msk [vmem:[#allocation3 + $0x8] sm:$0xff] %vm616, %v989
        %997 = vst.msk [vmem:[#allocation3 + $0x10] sm:$0xff] %vm614, %v986
        %998 = vst.msk [vmem:[#allocation3 + $0x18] sm:$0xff] %vm616, %v990
        %v999 = vld [vmem:[#allocation3] sm:$0xff]
        %v1000 = vld [vmem:[#allocation3 + $0x8] sm:$0xff]
        %v1001 = vld [vmem:[#allocation3 + $0x10] sm:$0xff]
        %v1002 = vld [vmem:[#allocation3 + $0x18] sm:$0xff]
        %1007 = vrot.lane.b32.xlu0 %v999, 126
        %v1008 = vpop.permute.xlu0 %1007
        %1009 = vrot.lane.b32.xlu0 %v1000, 126
        %v1010 = vpop.permute.xlu0 %1009
        %1011 = vrot.lane.b32.xlu0 %v1001, 126
        %v1012 = vpop.permute.xlu0 %1011
        %1013 = vrot.lane.b32.xlu0 %v1002, 126
        %v1014 = vpop.permute.xlu0 %1013
        %v1015 = vsel %vm496, %v1008, %v1010
        %v1016 = vsel %vm496, %v1012, %v1014
        %1017 = vrot.lane.b32.xlu0 %v999, 124
        %v1018 = vpop.permute.xlu0 %1017
        %1019 = vrot.lane.b32.xlu0 %v1000, 124
        %v1020 = vpop.permute.xlu0 %1019
        %1021 = vrot.lane.b32.xlu0 %v1001, 124
        %v1022 = vpop.permute.xlu0 %1021
        %1023 = vrot.lane.b32.xlu0 %v1002, 124
        %v1024 = vpop.permute.xlu0 %1023
        %v1025 = vsel %vm778, %v1018, %v1020
        %v1026 = vsel %vm778, %v1022, %v1024
        %v1027 = vld [vmem:[%s7] sm:$0xf]
        %v1028 = vld [vmem:[%s7 + $0x4] sm:$0xf]
        %v1029 = vld [vmem:[%s7 + $0x8] sm:$0xf]
        %v1030 = vld [vmem:[%s7 + $0xc] sm:$0xf]
        %v1031 = vld [vmem:[%s8] sm:$0xff]
        %v1032 = vld [vmem:[%s8 + $0x8] sm:$0xff]
        %v1033 = vld [vmem:[%s8 + $0x10] sm:$0xff]
        %v1034 = vld [vmem:[%s8 + $0x18] sm:$0xff]
        %1036 = vset.pattern.permute.xlu0 0
        %1037 = vperm.xlu0 %1036, %v1031
        %v1038 = vpop.permute.xlu0 %1037
        %1041 = vset.pattern.permute.xlu0 0
        %1042 = vperm.xlu0 %1041, %v1032
        %v1043 = vpop.permute.xlu0 %1042
        %1046 = vset.pattern.permute.xlu0 0
        %1047 = vperm.xlu0 %1046, %v1033
        %v1048 = vpop.permute.xlu0 %1047
        %1051 = vset.pattern.permute.xlu0 0
        %1052 = vperm.xlu0 %1051, %v1034
        %v1053 = vpop.permute.xlu0 %1052
        %v1059 = vunpack.c.l.b16 %v1027
        %v1060 = vunpack.c.l.b16 %v1028
        %v1061 = vunpack.c.l.b16 %v1029
        %v1062 = vunpack.c.l.b16 %v1030
        %v1063 = vpack.c.b16 %v1060, %v1059
        %v1064 = vpack.c.b16 %v1062, %v1061
        %1065 = vrot.lane.b32.xlu0 %v1015, 126
        %v1066 = vpop.permute.xlu0 %1065
        %1067 = vrot.lane.b32.xlu0 %v1010, 126
        %v1068 = vpop.permute.xlu0 %1067
        %1069 = vrot.lane.b32.xlu0 %v1016, 126
        %v1070 = vpop.permute.xlu0 %1069
        %1071 = vrot.lane.b32.xlu0 %v1014, 126
        %v1072 = vpop.permute.xlu0 %1071
        %1073 = vrot.lane.b32.xlu0 %v1025, 126
        %v1074 = vpop.permute.xlu0 %1073
        %1075 = vrot.lane.b32.xlu0 %v1020, 126
        %v1076 = vpop.permute.xlu0 %1075
        %1077 = vrot.lane.b32.xlu0 %v1026, 126
        %v1078 = vpop.permute.xlu0 %1077
        %1079 = vrot.lane.b32.xlu0 %v1024, 126
        %v1080 = vpop.permute.xlu0 %1079
        %v1081 = vsel %vm496, %v1066, %v1068
        %v1082 = vsel %vm496, %v1070, %v1072
        %v1083 = vsel %vm496, %v1074, %v1076
        %v1084 = vsel %vm496, %v1078, %v1080
        %vm1097 = vcmask 785408
        %v1099 = vsel %vm1097, %v1063, 0
        %v1102 = vsel %vm1097, %v1064, 0
        %1104 = vmatprep.subr.bf16.mxu0 %v1010
        %1105 = vmatpush1.bf16.msra.mxu0 %v1015
        %1106 = vmatprep.subr.bf16.mxu0 %v1014
        %1107 = vmatpush1.bf16.msra.mxu0 %v1016
        %1108 = vmatprep.subr.bf16.mxu0 %v1068
        %1109 = vmatpush1.bf16.msra.mxu0 %v1081
        %1110 = vmatprep.subr.bf16.mxu0 %v1072
        %1111 = vmatpush1.bf16.msra.mxu0 %v1082
        %1112 = vmatprep.subr.bf16.mxu0 %v1076
        %1113 = vmatpush1.bf16.msra.mxu0 %v1083
        %1114 = vmatprep.subr.bf16.mxu0 %v1080
        %1115 = vmatpush1.bf16.msra.mxu0 %v1084
        %1116 = vmatprep.subr.bf16.mxu0 0
        %1117 = vmatpush1.bf16.msra.mxu0 0
        %1118 = vmatprep.subr.bf16.mxu0 0
        %1119 = vmatpush1.bf16.msra.mxu0 0
        %1120 = vmatprep.subr.bf16.mxu0 0
        %1121 = vmatpush1.bf16.msra.mxu0 0
        %1122 = vmatprep.subr.bf16.mxu0 0
        %1123 = vmatpush1.bf16.msra.mxu0 0
        %1124 = vmatprep.subr.bf16.mxu0 0
        %1125 = vmatpush1.bf16.msra.mxu0 0
        %1126 = vmatprep.subr.bf16.mxu0 0
        %1127 = vmatpush1.bf16.msra.mxu0 0
        %1128 = vmatprep.subr.bf16.mxu0 0
        %1129 = vmatpush1.bf16.msra.mxu0 0
        %1130 = vmatprep.subr.bf16.mxu0 0
        %1131 = vmatpush1.bf16.msra.mxu0 0
        %1132 = vmatprep.subr.bf16.mxu0 0
        %1133 = vmatpush1.bf16.msra.mxu0 0
        %1134 = vmatprep.subr.bf16.mxu0 0
        %1135 = vmatpush1.bf16.msra.mxu0 0
        %1136 = vmatprep.mubr.bf16.mxu0 0
        %1137 = vmatmul.mubr.bf16.gmra.mrb[0].mxu0 %v1099
        %v1138 = vpop.f32.mrb[0].mxu0
        %v1139 = vadd.f32 %v1038, %v1138
        %v1140 = vpop.f32.mrb[0].mxu0
        %v1141 = vadd.f32 %v1038, %v1140
        %v1142 = vpop.f32.mrb[0].mxu0
        %v1143 = vadd.f32 %v1043, %v1142
        %v1144 = vpop.f32.mrb[0].mxu0
        %v1145 = vadd.f32 %v1043, %v1144
        %1146 = vmatprep.mubr.bf16.mxu0 0
        %1147 = vmatmul.mubr.bf16.gmra.mrb[0].mxu0 %v1102
        %v1148 = vpop.f32.mrb[0].mxu0
        %v1149 = vadd.f32 %v1048, %v1148
        %v1150 = vpop.f32.mrb[0].mxu0
        %v1151 = vadd.f32 %v1048, %v1150
        %v1152 = vpop.f32.mrb[0].mxu0
        %v1153 = vadd.f32 %v1053, %v1152
        %v1154 = vpop.f32.mrb[0].mxu0
        %v1155 = vadd.f32 %v1053, %v1154
        %1156 = vdwg.mxu0
        %v1157 = vmax.f32 %v1139, 0.0
        %v1158 = vmax.f32 %v1141, 0.0
        %v1159 = vmax.f32 %v1143, 0.0
        %v1160 = vmax.f32 %v1145, 0.0
        %v1161 = vmax.f32 %v1149, 0.0
        %v1162 = vmax.f32 %v1151, 0.0
        %v1163 = vmax.f32 %v1153, 0.0
        %v1164 = vmax.f32 %v1155, 0.0
        %v1165 = vadd.f32 %v1157, %v939
        %v1166 = vadd.f32 %v1158, %v941
        %v1167 = vadd.f32 %v1159, %v943
        %v1168 = vadd.f32 %v1160, %v945
        %v1169 = vadd.f32 %v1161, %v949
        %v1170 = vadd.f32 %v1162, %v951
        %v1171 = vadd.f32 %v1163, %v953
        %v1172 = vadd.f32 %v1164, %v955
        %v1173 = vmax.f32 %v1165, 0.0
        %v1174 = vmax.f32 %v1166, 0.0
        %v1175 = vmax.f32 %v1167, 0.0
        %v1176 = vmax.f32 %v1168, 0.0
        %v1177 = vmax.f32 %v1169, 0.0
        %v1178 = vmax.f32 %v1170, 0.0
        %v1179 = vmax.f32 %v1171, 0.0
        %v1180 = vmax.f32 %v1172, 0.0
        %v1181 = vsel %vm596, %v1173, 0.0
        %v1182 = vsel %vm597, %v1174, 0.0
        %v1183 = vsel %vm596, %v1175, 0.0
        %v1184 = vsel %vm597, %v1176, 0.0
        %v1185 = vsel %vm596, %v1177, 0.0
        %v1186 = vsel %vm597, %v1178, 0.0
        %v1187 = vsel %vm596, %v1179, 0.0
        %v1188 = vsel %vm597, %v1180, 0.0
        %v1189 = vpack.c.bf16 %v1183, %v1181
        %v1190 = vpack.c.bf16 %v1184, %v1182
        %v1191 = vpack.c.bf16 %v1187, %v1185
        %v1192 = vpack.c.bf16 %v1188, %v1186
        %1197 = vrot.lane.b32.xlu0 %v1189, 4
        %v1198 = vpop.permute.xlu0 %1197
        %1199 = vrot.lane.b32.xlu0 %v1190, 4
        %v1200 = vpop.permute.xlu0 %1199
        %1201 = vrot.lane.b32.xlu0 %v1191, 4
        %v1202 = vpop.permute.xlu0 %1201
        %1203 = vrot.lane.b32.xlu0 %v1192, 4
        %v1204 = vpop.permute.xlu0 %1203
        %v1205 = vsel %vm610, %v1198, %v1200
        %v1206 = vsel %vm610, %v1202, %v1204
        %1211 = vst.msk [vmem:[#allocation2] sm:$0xff] %vm614, %v1198
        %1212 = vst.msk [vmem:[#allocation2 + $0x8] sm:$0xff] %vm616, %v1205
        %1213 = vst.msk [vmem:[#allocation2 + $0x10] sm:$0xff] %vm614, %v1202
        %1214 = vst.msk [vmem:[#allocation2 + $0x18] sm:$0xff] %vm616, %v1206
        %v1215 = vld [vmem:[#allocation2] sm:$0xff]
        %v1216 = vld [vmem:[#allocation2 + $0x8] sm:$0xff]
        %v1217 = vld [vmem:[#allocation2 + $0x10] sm:$0xff]
        %v1218 = vld [vmem:[#allocation2 + $0x18] sm:$0xff]
        %1223 = vrot.lane.b32.xlu0 %v1215, 124
        %v1224 = vpop.permute.xlu0 %1223
        %1225 = vrot.lane.b32.xlu0 %v1216, 124
        %v1226 = vpop.permute.xlu0 %1225
        %1227 = vrot.lane.b32.xlu0 %v1217, 124
        %v1228 = vpop.permute.xlu0 %1227
        %1229 = vrot.lane.b32.xlu0 %v1218, 124
        %v1230 = vpop.permute.xlu0 %1229
        %v1231 = vsel %vm778, %v1224, %v1226
        %v1232 = vsel %vm778, %v1228, %v1230
        %1237 = vrot.lane.b32.xlu0 %v1215, 120
        %v1238 = vpop.permute.xlu0 %1237
        %1239 = vrot.lane.b32.xlu0 %v1216, 120
        %v1240 = vpop.permute.xlu0 %1239
        %1241 = vrot.lane.b32.xlu0 %v1217, 120
        %v1242 = vpop.permute.xlu0 %1241
        %1243 = vrot.lane.b32.xlu0 %v1218, 120
        %v1244 = vpop.permute.xlu0 %1243
        %vm1245 = vcmask 982016
        %v1246 = vsel %vm1245, %v1238, %v1240
        %v1247 = vsel %vm1245, %v1242, %v1244
        %v1252 = vld [vmem:[%s9] sm:$0xf]
        %v1253 = vld [vmem:[%s9 + $0x4] sm:$0xf]
        %v1254 = vld [vmem:[%s9 + $0x8] sm:$0xf]
        %v1255 = vld [vmem:[%s9 + $0xc] sm:$0xf]
        %v1256 = vld [vmem:[%s10] sm:$0xff]
        %v1257 = vld [vmem:[%s10 + $0x8] sm:$0xff]
        %v1258 = vld [vmem:[%s10 + $0x10] sm:$0xff]
        %v1259 = vld [vmem:[%s10 + $0x18] sm:$0xff]
        %1261 = vset.pattern.permute.xlu0 0
        %1262 = vperm.xlu0 %1261, %v1256
        %v1263 = vpop.permute.xlu0 %1262
        %1266 = vset.pattern.permute.xlu0 0
        %1267 = vperm.xlu0 %1266, %v1257
        %v1268 = vpop.permute.xlu0 %1267
        %1271 = vset.pattern.permute.xlu0 0
        %1272 = vperm.xlu0 %1271, %v1258
        %v1273 = vpop.permute.xlu0 %1272
        %1276 = vset.pattern.permute.xlu0 0
        %1277 = vperm.xlu0 %1276, %v1259
        %v1278 = vpop.permute.xlu0 %1277
        %v1284 = vunpack.c.l.b16 %v1252
        %v1285 = vunpack.c.l.b16 %v1253
        %v1286 = vunpack.c.l.b16 %v1254
        %v1287 = vunpack.c.l.b16 %v1255
        %v1288 = vpack.c.b16 %v1285, %v1284
        %v1289 = vpack.c.b16 %v1287, %v1286
        %v1291 = vsel %vm1097, %v1288, 0
        %v1294 = vsel %vm1097, %v1289, 0
        %1296 = vmatprep.subr.bf16.mxu0 %v1216
        %1297 = vmatpush1.bf16.msra.mxu0 %v1215
        %1298 = vmatprep.subr.bf16.mxu0 %v1218
        %1299 = vmatpush1.bf16.msra.mxu0 %v1217
        %1300 = vmatprep.subr.bf16.mxu0 %v1226
        %1301 = vmatpush1.bf16.msra.mxu0 %v1231
        %1302 = vmatprep.subr.bf16.mxu0 %v1230
        %1303 = vmatpush1.bf16.msra.mxu0 %v1232
        %1304 = vmatprep.subr.bf16.mxu0 %v1240
        %1305 = vmatpush1.bf16.msra.mxu0 %v1246
        %1306 = vmatprep.subr.bf16.mxu0 %v1244
        %1307 = vmatpush1.bf16.msra.mxu0 %v1247
        %1308 = vmatprep.subr.bf16.mxu0 0
        %1309 = vmatpush1.bf16.msra.mxu0 0
        %1310 = vmatprep.subr.bf16.mxu0 0
        %1311 = vmatpush1.bf16.msra.mxu0 0
        %1312 = vmatprep.subr.bf16.mxu0 0
        %1313 = vmatpush1.bf16.msra.mxu0 0
        %1314 = vmatprep.subr.bf16.mxu0 0
        %1315 = vmatpush1.bf16.msra.mxu0 0
        %1316 = vmatprep.subr.bf16.mxu0 0
        %1317 = vmatpush1.bf16.msra.mxu0 0
        %1318 = vmatprep.subr.bf16.mxu0 0
        %1319 = vmatpush1.bf16.msra.mxu0 0
        %1320 = vmatprep.subr.bf16.mxu0 0
        %1321 = vmatpush1.bf16.msra.mxu0 0
        %1322 = vmatprep.subr.bf16.mxu0 0
        %1323 = vmatpush1.bf16.msra.mxu0 0
        %1324 = vmatprep.subr.bf16.mxu0 0
        %1325 = vmatpush1.bf16.msra.mxu0 0
        %1326 = vmatprep.subr.bf16.mxu0 0
        %1327 = vmatpush1.bf16.msra.mxu0 0
        %1328 = vmatprep.mubr.bf16.mxu0 0
        %1329 = vmatmul.mubr.bf16.gmra.mrb[0].mxu0 %v1291
        %v1330 = vpop.f32.mrb[0].mxu0
        %v1331 = vadd.f32 %v1263, %v1330
        %v1332 = vpop.f32.mrb[0].mxu0
        %v1333 = vadd.f32 %v1263, %v1332
        %v1334 = vpop.f32.mrb[0].mxu0
        %v1335 = vadd.f32 %v1268, %v1334
        %v1336 = vpop.f32.mrb[0].mxu0
        %v1337 = vadd.f32 %v1268, %v1336
        %1338 = vmatprep.mubr.bf16.mxu0 0
        %1339 = vmatmul.mubr.bf16.gmra.mrb[0].mxu0 %v1294
        %v1340 = vpop.f32.mrb[0].mxu0
        %v1341 = vadd.f32 %v1273, %v1340
        %v1342 = vpop.f32.mrb[0].mxu0
        %v1343 = vadd.f32 %v1273, %v1342
        %v1344 = vpop.f32.mrb[0].mxu0
        %v1345 = vadd.f32 %v1278, %v1344
        %v1346 = vpop.f32.mrb[0].mxu0
        %v1347 = vadd.f32 %v1278, %v1346
        %1348 = vdwg.mxu0
        %v1349 = vmax.f32 %v1331, 0.0
        %v1350 = vmax.f32 %v1333, 0.0
        %v1351 = vmax.f32 %v1335, 0.0
        %v1352 = vmax.f32 %v1337, 0.0
        %v1353 = vmax.f32 %v1341, 0.0
        %v1354 = vmax.f32 %v1343, 0.0
        %v1355 = vmax.f32 %v1345, 0.0
        %v1356 = vmax.f32 %v1347, 0.0
        %v1357 = vunpack.c.l.bf16 %v1215
        %v1358 = vunpack.c.l.bf16 %v1216
        %v1359 = vunpack.c.h.bf16 %v1215
        %v1360 = vunpack.c.h.bf16 %v1216
        %v1361 = vunpack.c.l.bf16 %v1217
        %v1362 = vunpack.c.l.bf16 %v1218
        %v1363 = vunpack.c.h.bf16 %v1217
        %v1364 = vunpack.c.h.bf16 %v1218
        %v1365 = vsel %vm596, %v1349, 0.0
        %v1366 = vsel %vm597, %v1350, 0.0
        %v1367 = vsel %vm596, %v1351, 0.0
        %v1368 = vsel %vm597, %v1352, 0.0
        %v1369 = vsel %vm596, %v1353, 0.0
        %v1370 = vsel %vm597, %v1354, 0.0
        %v1371 = vsel %vm596, %v1355, 0.0
        %v1372 = vsel %vm597, %v1356, 0.0
        %v1373 = vpack.c.bf16 %v1367, %v1365
        %v1374 = vpack.c.bf16 %v1368, %v1366
        %v1375 = vpack.c.bf16 %v1371, %v1369
        %v1376 = vpack.c.bf16 %v1372, %v1370
        %1381 = vrot.lane.b32.xlu0 %v1373, 4
        %v1382 = vpop.permute.xlu0 %1381
        %1383 = vrot.lane.b32.xlu0 %v1374, 4
        %v1384 = vpop.permute.xlu0 %1383
        %1385 = vrot.lane.b32.xlu0 %v1375, 4
        %v1386 = vpop.permute.xlu0 %1385
        %1387 = vrot.lane.b32.xlu0 %v1376, 4
        %v1388 = vpop.permute.xlu0 %1387
        %v1389 = vsel %vm610, %v1382, %v1384
        %v1390 = vsel %vm610, %v1386, %v1388
        %1395 = vst.msk [vmem:[#allocation3] sm:$0xff] %vm614, %v1382
        %1396 = vst.msk [vmem:[#allocation3 + $0x8] sm:$0xff] %vm616, %v1389
        %1397 = vst.msk [vmem:[#allocation3 + $0x10] sm:$0xff] %vm614, %v1386
        %1398 = vst.msk [vmem:[#allocation3 + $0x18] sm:$0xff] %vm616, %v1390
        %v1399 = vld [vmem:[#allocation3] sm:$0xff]
        %v1400 = vld [vmem:[#allocation3 + $0x8] sm:$0xff]
        %v1401 = vld [vmem:[#allocation3 + $0x10] sm:$0xff]
        %v1402 = vld [vmem:[#allocation3 + $0x18] sm:$0xff]
        %1407 = vrot.lane.b32.xlu0 %v1399, 124
        %v1408 = vpop.permute.xlu0 %1407
        %1409 = vrot.lane.b32.xlu0 %v1400, 124
        %v1410 = vpop.permute.xlu0 %1409
        %1411 = vrot.lane.b32.xlu0 %v1401, 124
        %v1412 = vpop.permute.xlu0 %1411
        %1413 = vrot.lane.b32.xlu0 %v1402, 124
        %v1414 = vpop.permute.xlu0 %1413
        %v1415 = vsel %vm778, %v1408, %v1410
        %v1416 = vsel %vm778, %v1412, %v1414
        %1421 = vrot.lane.b32.xlu0 %v1399, 120
        %v1422 = vpop.permute.xlu0 %1421
        %1423 = vrot.lane.b32.xlu0 %v1400, 120
        %v1424 = vpop.permute.xlu0 %1423
        %1425 = vrot.lane.b32.xlu0 %v1401, 120
        %v1426 = vpop.permute.xlu0 %1425
        %1427 = vrot.lane.b32.xlu0 %v1402, 120
        %v1428 = vpop.permute.xlu0 %1427
        %v1429 = vsel %vm1245, %v1422, %v1424
        %v1430 = vsel %vm1245, %v1426, %v1428
        %v1435 = vld [vmem:[%s11] sm:$0xf]
        %v1436 = vld [vmem:[%s11 + $0x4] sm:$0xf]
        %v1437 = vld [vmem:[%s11 + $0x8] sm:$0xf]
        %v1438 = vld [vmem:[%s11 + $0xc] sm:$0xf]
        %v1439 = vld [vmem:[%s12] sm:$0xff]
        %v1440 = vld [vmem:[%s12 + $0x8] sm:$0xff]
        %v1441 = vld [vmem:[%s12 + $0x10] sm:$0xff]
        %v1442 = vld [vmem:[%s12 + $0x18] sm:$0xff]
        %1444 = vset.pattern.permute.xlu0 0
        %1445 = vperm.xlu0 %1444, %v1439
        %v1446 = vpop.permute.xlu0 %1445
        %1449 = vset.pattern.permute.xlu0 0
        %1450 = vperm.xlu0 %1449, %v1440
        %v1451 = vpop.permute.xlu0 %1450
        %1454 = vset.pattern.permute.xlu0 0
        %1455 = vperm.xlu0 %1454, %v1441
        %v1456 = vpop.permute.xlu0 %1455
        %1459 = vset.pattern.permute.xlu0 0
        %1460 = vperm.xlu0 %1459, %v1442
        %v1461 = vpop.permute.xlu0 %1460
        %v1467 = vunpack.c.l.b16 %v1435
        %v1468 = vunpack.c.l.b16 %v1436
        %v1469 = vunpack.c.l.b16 %v1437
        %v1470 = vunpack.c.l.b16 %v1438
        %v1471 = vpack.c.b16 %v1468, %v1467
        %v1472 = vpack.c.b16 %v1470, %v1469
        %v1474 = vsel %vm1097, %v1471, 0
        %v1477 = vsel %vm1097, %v1472, 0
        %1479 = vmatprep.subr.bf16.mxu0 %v1400
        %1480 = vmatpush1.bf16.msra.mxu0 %v1399
        %1481 = vmatprep.subr.bf16.mxu0 %v1402
        %1482 = vmatpush1.bf16.msra.mxu0 %v1401
        %1483 = vmatprep.subr.bf16.mxu0 %v1410
        %1484 = vmatpush1.bf16.msra.mxu0 %v1415
        %1485 = vmatprep.subr.bf16.mxu0 %v1414
        %1486 = vmatpush1.bf16.msra.mxu0 %v1416
        %1487 = vmatprep.subr.bf16.mxu0 %v1424
        %1488 = vmatpush1.bf16.msra.mxu0 %v1429
        %1489 = vmatprep.subr.bf16.mxu0 %v1428
        %1490 = vmatpush1.bf16.msra.mxu0 %v1430
        %1491 = vmatprep.subr.bf16.mxu0 0
        %1492 = vmatpush1.bf16.msra.mxu0 0
        %1493 = vmatprep.subr.bf16.mxu0 0
        %1494 = vmatpush1.bf16.msra.mxu0 0
        %1495 = vmatprep.subr.bf16.mxu0 0
        %1496 = vmatpush1.bf16.msra.mxu0 0
        %1497 = vmatprep.subr.bf16.mxu0 0
        %1498 = vmatpush1.bf16.msra.mxu0 0
        %1499 = vmatprep.subr.bf16.mxu0 0
        %1500 = vmatpush1.bf16.msra.mxu0 0
        %1501 = vmatprep.subr.bf16.mxu0 0
        %1502 = vmatpush1.bf16.msra.mxu0 0
        %1503 = vmatprep.subr.bf16.mxu0 0
        %1504 = vmatpush1.bf16.msra.mxu0 0
        %1505 = vmatprep.subr.bf16.mxu0 0
        %1506 = vmatpush1.bf16.msra.mxu0 0
        %1507 = vmatprep.subr.bf16.mxu0 0
        %1508 = vmatpush1.bf16.msra.mxu0 0
        %1509 = vmatprep.subr.bf16.mxu0 0
        %1510 = vmatpush1.bf16.msra.mxu0 0
        %1511 = vmatprep.mubr.bf16.mxu0 0
        %1512 = vmatmul.mubr.bf16.gmra.mrb[0].mxu0 %v1474
        %v1513 = vpop.f32.mrb[0].mxu0
        %v1514 = vadd.f32 %v1446, %v1513
        %v1515 = vpop.f32.mrb[0].mxu0
        %v1516 = vadd.f32 %v1446, %v1515
        %v1517 = vpop.f32.mrb[0].mxu0
        %v1518 = vadd.f32 %v1451, %v1517
        %v1519 = vpop.f32.mrb[0].mxu0
        %v1520 = vadd.f32 %v1451, %v1519
        %1521 = vmatprep.mubr.bf16.mxu0 0
        %1522 = vmatmul.mubr.bf16.gmra.mrb[0].mxu0 %v1477
        %v1523 = vpop.f32.mrb[0].mxu0
        %v1524 = vadd.f32 %v1456, %v1523
        %v1525 = vpop.f32.mrb[0].mxu0
        %v1526 = vadd.f32 %v1456, %v1525
        %v1527 = vpop.f32.mrb[0].mxu0
        %v1528 = vadd.f32 %v1461, %v1527
        %v1529 = vpop.f32.mrb[0].mxu0
        %v1530 = vadd.f32 %v1461, %v1529
        %1531 = vdwg.mxu0
        %v1532 = vmax.f32 %v1514, 0.0
        %v1533 = vmax.f32 %v1516, 0.0
        %v1534 = vmax.f32 %v1518, 0.0
        %v1535 = vmax.f32 %v1520, 0.0
        %v1536 = vmax.f32 %v1524, 0.0
        %v1537 = vmax.f32 %v1526, 0.0
        %v1538 = vmax.f32 %v1528, 0.0
        %v1539 = vmax.f32 %v1530, 0.0
        %1548 = vrot.lane.b32.xlu0 %v1357, 124
        %v1549 = vpop.permute.xlu0 %1548
        %1550 = vrot.lane.b32.xlu0 %v1358, 124
        %v1551 = vpop.permute.xlu0 %1550
        %1552 = vrot.lane.b32.xlu0 %v1359, 124
        %v1553 = vpop.permute.xlu0 %1552
        %1554 = vrot.lane.b32.xlu0 %v1360, 124
        %v1555 = vpop.permute.xlu0 %1554
        %1556 = vrot.lane.b32.xlu0 %v1361, 124
        %v1557 = vpop.permute.xlu0 %1556
        %1558 = vrot.lane.b32.xlu0 %v1362, 124
        %v1559 = vpop.permute.xlu0 %1558
        %1560 = vrot.lane.b32.xlu0 %v1363, 124
        %v1561 = vpop.permute.xlu0 %1560
        %1562 = vrot.lane.b32.xlu0 %v1364, 124
        %v1563 = vpop.permute.xlu0 %1562
        %v1564 = vsel %vm616, %v1549, %v1551
        %v1565 = vsel %vm616, %v1553, %v1555
        %v1566 = vsel %vm616, %v1557, %v1559
        %v1567 = vsel %vm616, %v1561, %v1563
        %v1576 = vadd.f32 %v1532, %v1564
        %v1577 = vadd.f32 %v1533, %v1551
        %v1578 = vadd.f32 %v1534, %v1565
        %v1579 = vadd.f32 %v1535, %v1555
        %v1580 = vadd.f32 %v1536, %v1566
        %v1581 = vadd.f32 %v1537, %v1559
        %v1582 = vadd.f32 %v1538, %v1567
        %v1583 = vadd.f32 %v1539, %v1563
        %v1584 = vmax.f32 %v1576, 0.0
        %v1585 = vmax.f32 %v1577, 0.0
        %v1586 = vmax.f32 %v1578, 0.0
        %v1587 = vmax.f32 %v1579, 0.0
        %v1588 = vmax.f32 %v1580, 0.0
        %v1589 = vmax.f32 %v1581, 0.0
        %v1590 = vmax.f32 %v1582, 0.0
        %v1591 = vmax.f32 %v1583, 0.0
        %vm1592 = vcmask 523264
        %1593 = vst.msk [vmem:[%s433] sm:$0xff] %vm1592, %v1584
        %1594 = vst.msk [vmem:[%s433 + $0x8] sm:$0xff] %vm1592, %v1586
        %1595 = vst.msk [vmem:[%s433 + $0x10] sm:$0xff] %vm1592, %v1588
        %1596 = vst.msk [vmem:[%s433 + $0x18] sm:$0xff] %vm1592, %v1590
        %s1597 = scalar_lea.vmem %s433, 32 [#allocation4]
        %1598 = vst.msk [vmem:[%s1597] sm:$0xff] %vm1592, %v1585
        %1599 = vst.msk [vmem:[%s1597 + $0x8] sm:$0xff] %vm1592, %v1587
        %1600 = vst.msk [vmem:[%s1597 + $0x10] sm:$0xff] %vm1592, %v1589
        %1601 = vst.msk [vmem:[%s1597 + $0x18] sm:$0xff] %vm1592, %v1591
        %s1602 = sand.u32 %s313, 1
        %s1603 = scalar_lea.sflag [#allocation5], %s1602
        %s1604 = sand.u32 %s313, 1
        %s1605 = smul.addr %s1604, 64
        %s1606 = scalar_lea.vmem [#allocation4], %s1605
        // Predicated region
        $region73: #{temporal_conv_net_pallas.1} parent=71 // pred_check
          %p1607 = pneg %p323
        $region74: #{temporal_conv_net_pallas.1} parent=71 // pred_check_branch
          %1609 = sbr.rel (%p1607) target = $region76
        $region75: #{temporal_conv_net_pallas.1} parent=71 // pred_region
          %s1610 = smul.u32 2, %s27
          %s1612 = ssub.s32 1024, 1024
          %1613 = vsyncadd %s1603, %s1612
          %s1614 = smul.addr %s1610, 4
          %s1615 = smul.addr %s1614, 128
          %s1616 = scalar_lea.hbm %s13, %s1615
          %s1617 = sshll.u32 %s1606, 4
          %s1618 = int_to_ptr.vmem [resolvable:$true] %s1617
          %1623 = dma.vmem_to_hbm [thread:$0]  %s1618, 1024, %s1616, %s1603, 128, 128, 8
        $region76: #{temporal_conv_net_pallas.1} parent=71 // pred_fallthru
          _
      $region72: #{temporal_conv_net_pallas.1} parent=5 // pred_fallthru
        _
      %p1624 = scmp.le.s32.totalorder 2, %s22
      // Predicated region
      $region77: #{temporal_conv_net_pallas.1} parent=5 // pred_check
        %p1625 = pneg %p1624
      $region78: #{temporal_conv_net_pallas.1} parent=5 // pred_check_branch
        %1627 = sbr.rel (%p1625) target = $region80
      $region79: #{temporal_conv_net_pallas.1} parent=5 // pred_region
        %s1628 = ssub.s32 %s22, 2
        // Predicated region
        $region81: #{temporal_conv_net_pallas.1} parent=79 // pred_check
          %p1629 = pneg %p329
        $region82: #{temporal_conv_net_pallas.1} parent=79 // pred_check_branch
          %1631 = sbr.rel (%p1629) target = $region84
        $region83: #{temporal_conv_net_pallas.1} parent=79 // pred_region
          %s1632 = sand.u32 %s314, 1
          %s1633 = scalar_lea.sflag [#allocation5], %s1632
          %s1634 = sand.u32 %s314, 1
          %s1635 = smul.addr %s1634, 64
          %s1636 = scalar_lea.vmem [#allocation4], %s1635
          %1637 = dma.done %s1633, 1024
        $region84: #{temporal_conv_net_pallas.1} parent=79 // pred_fallthru
          _
      $region80: #{temporal_conv_net_pallas.1} parent=5 // pred_fallthru
        _
    $region6: #{temporal_conv_net_pallas.1} parent=1 // loop_footer
      %s26 = sadd.s32 1, %s22
    $region7: #{temporal_conv_net_pallas.1} parent=1 // loop_footer_branch
      %21 = sbr.rel target = $region3
    $region8: #{temporal_conv_net_pallas.1} parent=1 // loop_exit
      _
    %1638 = vsyncpa [#allocation5], 1
    %s1639 = scalar_lea.sflag [#allocation5], 1
    %1640 = vsyncpa %s1639, 1

</llo_original>
